<compile_context>
chip_gen: v7x
topology: tpu7x:2x2x1
jax: 0.10.0
libtpu: 0.0.40
codegen_flags: <defaults>
</compile_context>

<pallas_src>
import jax
import jax.numpy as jnp
from jax.experimental import pallas as pl
from jax.experimental.pallas import tpu as pltpu

GROUP = 8  # batch rows per inner-loop step (one sublane tile)


def _round_up(x, m):
    return ((x + m - 1) // m) * m


def _volterra_kernel(s_ref, ust_ref, ust_bf_ref, ust_t_ref, ust_t_bf_ref,
                     h0_ref, h1_ref, h2_ref, o_ref,
                     sh_ref, sht_ref, base_ref):
    f32 = jnp.float32
    bf16 = jnp.bfloat16

    tb = s_ref.shape[0]
    n_groups = tb // GROUP

    # ---------- prologue: s_hat, s_hat^T, z0 + z1 (once per batch tile) ----------
    s = s_ref[...]                                               # (TB, Ne) f32
    ust = ust_ref[...]                                           # (Ne, Ne) f32
    ust_t = ust_t_ref[...]                                       # (Ne, Ne) f32 = U_ST^T

    s_hat = jnp.dot(s, ust, preferred_element_type=f32)          # exact f32 s_hat
    sh_ref[...] = s_hat

    # s_hat^T via the MXU (A @ B^T contraction, no in-kernel transpose op); sliced
    # into a (n_groups, Ne, GROUP) scratch so the group loop only uses static lane
    # slices and dynamic leading-axis indexing.
    sh_t = jax.lax.dot_general(ust_t, s, (((1,), (1,)), ((), ())),
                               preferred_element_type=f32)       # (Ne, TB)
    for g in range(n_groups):                                    # static prologue loop
        sht_ref[g] = sh_t[:, g * GROUP:(g + 1) * GROUP]

    # z0 + z1 (z1 matmul with bf16 operands, f32 accumulation)
    z1 = jnp.dot((h1_ref[...] * s_hat).astype(bf16), ust_bf_ref[...],
                 preferred_element_type=f32)                     # (TB, Ne)
    base_ref[...] = h0_ref[...] + z1

    # loop-invariant operands hoisted out of the group loop (no per-iteration casts)
    h2 = h2_ref[...]                                             # (Ne, Ne) f32
    ust_t_bf = ust_t_bf_ref[...]                                 # (Ne, Ne) bf16

    # ---------- quadratic term: stream one (Ne,Ne) LHS per batch row -------------
    # z2[r,n] = sum_{p,q} U[n,p] s_hat[r,p] H2[p,q] s_hat[r,q] U[n,q]
    #         = sum_p U_T[p,n] * W_r[p,n],   W_r = LHS_r @ U_T
    def group_body(g, carry):
        r0 = pl.multiple_of(g * GROUP, GROUP)
        sh8 = sh_ref[pl.ds(r0, GROUP), :]                        # (8, Ne)  row factor
        sh8_t = sht_ref[g]                                       # (Ne, 8)  col factor

        rows = []
        for r in range(GROUP):
            col = sh8_t[:, r:r + 1]                              # (Ne, 1) f32
            row = sh8[r:r + 1, :]                                # (1, Ne) f32
            # LHS[p,q] = s_hat[p] * H2[p,q] * s_hat[q]  (f32 build, single bf16 cast)
            lhs = (col * h2 * row).astype(bf16)                  # (Ne, Ne) bf16
            # W[p,n] = sum_q LHS[p,q] * U_ST[n,q]   (resident U_ST^T weights)
            w = jnp.dot(lhs, ust_t_bf, preferred_element_type=f32)     # (Ne, Ne) f32
            # z2[n] = sum_p U_ST[n,p] * W[p,n]      (VPU mul + sublane reduce)
            rows.append(jnp.sum(ust_t * w, axis=0, keepdims=True))     # (1, Ne)
        z2 = jnp.concatenate(rows, axis=0)                       # (8, Ne)

        # one dense (8, Ne) store per group; no read-modify-write of o_ref
        o_ref[pl.ds(r0, GROUP), :] = base_ref[pl.ds(r0, GROUP), :] + z2
        return carry

    if n_groups % 4 == 0:
        unroll = 4
    elif n_groups % 2 == 0:
        unroll = 2
    else:
        unroll = 1
    jax.lax.fori_loop(0, n_groups, group_body, 0, unroll=unroll)


def _choose_tiling(batch, max_tile_b):
    max_tile_b = max(GROUP, (max_tile_b // GROUP) * GROUP)
    b_min = _round_up(batch, GROUP)
    if b_min > max_tile_b:
        tile_b = max_tile_b
    elif b_min >= 2 * GROUP:
        # mid-size batch: split into >=2 "parallel" tiles (v7x has 2 TensorCores)
        tile_b = _round_up((b_min + 1) // 2, GROUP)
    else:
        tile_b = b_min
    b_pad = _round_up(b_min, tile_b)
    return tile_b, b_pad


def graph_volterra_forward(s, U_ST, h0, h1_full, H2_eff, *, max_tile_b=128):
    """s: (B, Ne) f32.  U_ST, H2_eff: (Ne, Ne).  h0, h1_full: (Ne,).  -> (B, Ne) f32."""
    B, Ne = s.shape
    tile_b, b_pad = _choose_tiling(B, max_tile_b)
    assert tile_b % GROUP == 0 and b_pad % tile_b == 0

    s = jnp.asarray(s, jnp.float32)
    if b_pad != B:
        s = jnp.pad(s, ((0, b_pad - B), (0, 0)))     # zero rows -> harmless

    ust = jnp.asarray(U_ST, jnp.float32)
    ust_t = ust.T                                     # transposed once, outside kernel
    ust_bf = ust.astype(jnp.bfloat16)
    ust_t_bf = ust_t.astype(jnp.bfloat16)
    h2 = jnp.asarray(H2_eff, jnp.float32)
    h0_2d = jnp.asarray(h0, jnp.float32).reshape(1, Ne)
    h1_2d = jnp.asarray(h1_full, jnp.float32).reshape(1, Ne)

    n_groups = tile_b // GROUP
    cost = pl.CostEstimate(
        flops=2 * b_pad * Ne ** 3 + 10 * b_pad * Ne ** 2,
        transcendentals=0,
        bytes_accessed=2 * b_pad * Ne * 4 + 3 * Ne * Ne * 4 + 2 * Ne * Ne * 2
        + 2 * Ne * 4,
    )

    out = pl.pallas_call(
        _volterra_kernel,
        out_shape=jax.ShapeDtypeStruct((b_pad, Ne), jnp.float32),
        grid=(b_pad // tile_b,),
        in_specs=[
            pl.BlockSpec((tile_b, Ne), lambda i: (i, 0)),   # s            (batch tiled)
            pl.BlockSpec((Ne, Ne), lambda i: (0, 0)),       # U_ST   f32   (invariant)
            pl.BlockSpec((Ne, Ne), lambda i: (0, 0)),       # U_ST   bf16
            pl.BlockSpec((Ne, Ne), lambda i: (0, 0)),       # U_ST^T f32
            pl.BlockSpec((Ne, Ne), lambda i: (0, 0)),       # U_ST^T bf16
            pl.BlockSpec((1, Ne), lambda i: (0, 0)),        # h0
            pl.BlockSpec((1, Ne), lambda i: (0, 0)),        # full h_hat_1
            pl.BlockSpec((Ne, Ne), lambda i: (0, 0)),       # H2_effective f32
        ],
        out_specs=pl.BlockSpec((tile_b, Ne), lambda i: (i, 0)),
        scratch_shapes=[
            pltpu.VMEM((tile_b, Ne), jnp.float32),           # s_hat
            pltpu.VMEM((n_groups, Ne, GROUP), jnp.float32),  # s_hat^T per 8-row group
            pltpu.VMEM((tile_b, Ne), jnp.float32),           # z0 + z1
        ],
        compiler_params=pltpu.CompilerParams(
            dimension_semantics=("parallel",),               # batch tiles independent
            vmem_limit_bytes=32 * 1024 * 1024,               # lowered; actual use << 2 MiB
        ),
        cost_estimate=cost,
    )(s, ust, ust_bf, ust_t, ust_t_bf, h0_2d, h1_2d, h2)
    return out[:B]


def _reference(s, U_ST, h0, h1_full, H2_eff):
    """Pure-JAX f32 mirror of the PyTorch forward, for validation."""
    s_hat = s @ U_ST
    z1 = (h1_full[None, :] * s_hat) @ U_ST
    A = s_hat[:, None, :] * U_ST[None, :, :]           # A[b,n,p] = U[n,p] * s_hat[b,p]
    G = jnp.einsum('bnp,pq->bnq', A, H2_eff)
    z2 = jnp.sum(A * G, axis=-1)
    return h0[None, :] + z1 + z2


if __name__ == "__main__":
    key = jax.random.PRNGKey(0)
    Ns, Nt, K_T1, K_T2, B = 8, 16, 4, 3, 2
    Ne = Ns * Nt  # 128

    k = jax.random.split(key, 7)
    # buffers (graph / temporal GFT bases) + parameters, deterministic init
    U_G = jax.random.normal(k[0], (Ns, Ns), jnp.float32)
    U_P_T = jax.random.normal(k[1], (Nt, Nt), jnp.float32)
    h0 = jax.random.normal(k[2], (Ne,), jnp.float32) * 0.01
    h_hat_1_coeffs = jax.random.normal(k[3], (Ns, K_T1), jnp.float32) * 0.01
    H_hat_2_S = jax.random.normal(k[4], (Ns, Ns), jnp.float32) * 0.01
    H_hat_2_T_coeffs = jax.random.normal(k[5], (K_T2, K_T2), jnp.float32) * 0.01
    s_effective_batch = jax.random.normal(k[6], (B, Ne), jnp.float32)

    # parameter-reconstruction glue (mirrors the module's buffers / _reconstruct_*)
    U_ST = jnp.kron(U_G, U_P_T)                                   # (Ne, Ne)
    basis1 = U_P_T[:, :K_T1]
    basis2 = U_P_T[:, :K_T2]
    h1_full = (h_hat_1_coeffs @ basis1.T).reshape(-1)             # (Ne,)
    full_H2_T = basis2 @ (H_hat_2_T_coeffs @ basis2.T)            # (Nt, Nt)
    H2_eff = jnp.kron(H_hat_2_S, full_H2_T)                       # (Ne, Ne)

    out = graph_volterra_forward(s_effective_batch, U_ST, h0, h1_full, H2_eff)
    out = jax.block_until_ready(out)

    ref = _reference(s_effective_batch, U_ST, h0, h1_full, H2_eff)
    assert out.shape == (B, Ne)
    # Quadratic term uses bf16 MXU operands (f32 accumulation) -> scale-relative bound.
    scale = float(jnp.max(jnp.abs(ref)))
    max_err = float(jnp.max(jnp.abs(out - ref)))
    assert max_err <= 3e-2 * scale, f"max_err={max_err}, scale={scale}"
    print("KERNEL_OK")
</pallas_src>

<mosaic_0001>
module attributes {stable_mosaic.version = 11 : i64} {
  func.func @_volterra_kernel(%arg0: i32, %arg1: memref<8x128xf32, #tpu.memory_space<vmem>>, %arg2: memref<128x128xf32, #tpu.memory_space<vmem>>, %arg3: memref<128x128xbf16, #tpu.memory_space<vmem>>, %arg4: memref<128x128xf32, #tpu.memory_space<vmem>>, %arg5: memref<128x128xbf16, #tpu.memory_space<vmem>>, %arg6: memref<1x128xf32, #tpu.memory_space<vmem>>, %arg7: memref<1x128xf32, #tpu.memory_space<vmem>>, %arg8: memref<128x128xf32, #tpu.memory_space<vmem>>, %arg9: memref<8x128xf32, #tpu.memory_space<vmem>>, %arg10: memref<8x128xf32, #tpu.memory_space<vmem>>, %arg11: memref<1x128x8xf32, #tpu.memory_space<vmem>>, %arg12: memref<8x128xf32, #tpu.memory_space<vmem>>) attributes {dimension_semantics = [#tpu.dimension_semantics<parallel>], iteration_bounds = array<i64: 1>, scalar_prefetch = 0 : i64, scratch_operands = 3 : i64, tpu.core_type = #tpu.core_type<tc>, window_params = [{transform_indices = @transform_0, window_bounds = array<i64: 8, 128>}, {pipeline_mode = #tpu.pipeline_mode<synchronous>, transform_indices = @transform_1, window_bounds = array<i64: 128, 128>}, {pipeline_mode = #tpu.pipeline_mode<synchronous>, transform_indices = @transform_2, window_bounds = array<i64: 128, 128>}, {pipeline_mode = #tpu.pipeline_mode<synchronous>, transform_indices = @transform_3, window_bounds = array<i64: 128, 128>}, {pipeline_mode = #tpu.pipeline_mode<synchronous>, transform_indices = @transform_4, window_bounds = array<i64: 128, 128>}, {pipeline_mode = #tpu.pipeline_mode<synchronous>, transform_indices = @transform_5, window_bounds = array<i64: 1, 128>}, {pipeline_mode = #tpu.pipeline_mode<synchronous>, transform_indices = @transform_6, window_bounds = array<i64: 1, 128>}, {pipeline_mode = #tpu.pipeline_mode<synchronous>, transform_indices = @transform_7, window_bounds = array<i64: 128, 128>}, {transform_indices = @transform_8, window_bounds = array<i64: 8, 128>}]} {
    %c0 = arith.constant 0 : index
    %c0_0 = arith.constant 0 : index
    %0 = vector.load %arg1[%c0, %c0_0] : memref<8x128xf32, #tpu.memory_space<vmem>>, vector<8x128xf32>
    %c0_1 = arith.constant 0 : index
    %c0_2 = arith.constant 0 : index
    %1 = vector.load %arg2[%c0_1, %c0_2] : memref<128x128xf32, #tpu.memory_space<vmem>>, vector<128x128xf32>
    %c0_3 = arith.constant 0 : index
    %c0_4 = arith.constant 0 : index
    %2 = vector.load %arg4[%c0_3, %c0_4] : memref<128x128xf32, #tpu.memory_space<vmem>>, vector<128x128xf32>
    %cst = arith.constant dense<0.000000e+00> : vector<8x128xf32>
    %3 = tpu.matmul %0, %1, %cst {dimension_numbers = #tpu.dot_dimension_numbers<[1], [0], [0], [1], [0, 0, 1, 1], [], []>} : vector<8x128xf32>, vector<128x128xf32>, vector<8x128xf32> -> vector<8x128xf32>
    %c0_5 = arith.constant 0 : index
    %c0_6 = arith.constant 0 : index
    %4 = vector.load %arg10[%c0_5, %c0_6] : memref<8x128xf32, #tpu.memory_space<vmem>>, vector<8x128xf32>
    tpu.vector_store %arg10[%c0_5, %c0_6], %3 {strides = array<i32>} : memref<8x128xf32, #tpu.memory_space<vmem>>, vector<8x128xf32>,
    %cst_7 = arith.constant dense<0.000000e+00> : vector<128x8xf32>
    %5 = tpu.matmul %2, %0, %cst_7 {dimension_numbers = #tpu.dot_dimension_numbers<[1], [1], [0], [0], [0, 0, 1, 0], [], []>} : vector<128x128xf32>, vector<8x128xf32>, vector<128x8xf32> -> vector<128x8xf32>
    %c0_8 = arith.constant 0 : index
    %c0_9 = arith.constant 0 : index
    %c0_10 = arith.constant 0 : index
    %6 = vector.load %arg11[%c0_8, %c0_9, %c0_10] : memref<1x128x8xf32, #tpu.memory_space<vmem>>, vector<1x128x8xf32>
    %7 = vector.shape_cast %6 : vector<1x128x8xf32> to vector<128x8xf32>
    %8 = vector.shape_cast %5 : vector<128x8xf32> to vector<1x128x8xf32>
    tpu.vector_store %arg11[%c0_8, %c0_9, %c0_10], %8 {strides = array<i32>} : memref<1x128x8xf32, #tpu.memory_space<vmem>>, vector<1x128x8xf32>,
    %c0_11 = arith.constant 0 : index
    %c0_12 = arith.constant 0 : index
    %9 = vector.load %arg7[%c0_11, %c0_12] : memref<1x128xf32, #tpu.memory_space<vmem>>, vector<1x128xf32>
    %10 = vector.broadcast %9 : vector<1x128xf32> to vector<8x128xf32>
    %11 = arith.mulf %10, %3 : vector<8x128xf32>
    %12 = arith.truncf %11 : vector<8x128xf32> to vector<8x128xbf16>
    %c0_13 = arith.constant 0 : index
    %c0_14 = arith.constant 0 : index
    %13 = vector.load %arg3[%c0_13, %c0_14] : memref<128x128xbf16, #tpu.memory_space<vmem>>, vector<128x128xbf16>
    %cst_15 = arith.constant dense<0.000000e+00> : vector<8x128xf32>
    %14 = tpu.matmul %12, %13, %cst_15 {dimension_numbers = #tpu.dot_dimension_numbers<[1], [0], [0], [1], [0, 0, 1, 1], [], []>} : vector<8x128xbf16>, vector<128x128xbf16>, vector<8x128xf32> -> vector<8x128xf32>
    %c0_16 = arith.constant 0 : index
    %c0_17 = arith.constant 0 : index
    %15 = vector.load %arg6[%c0_16, %c0_17] : memref<1x128xf32, #tpu.memory_space<vmem>>, vector<1x128xf32>
    %16 = vector.broadcast %15 : vector<1x128xf32> to vector<8x128xf32>
    %17 = arith.addf %16, %14 : vector<8x128xf32>
    %c0_18 = arith.constant 0 : index
    %c0_19 = arith.constant 0 : index
    %18 = vector.load %arg12[%c0_18, %c0_19] : memref<8x128xf32, #tpu.memory_space<vmem>>, vector<8x128xf32>
    tpu.vector_store %arg12[%c0_18, %c0_19], %17 {strides = array<i32>} : memref<8x128xf32, #tpu.memory_space<vmem>>, vector<8x128xf32>,
    %c0_20 = arith.constant 0 : index
    %c0_21 = arith.constant 0 : index
    %19 = vector.load %arg8[%c0_20, %c0_21] : memref<128x128xf32, #tpu.memory_space<vmem>>, vector<128x128xf32>
    %c0_22 = arith.constant 0 : index
    %c0_23 = arith.constant 0 : index
    %20 = vector.load %arg5[%c0_22, %c0_23] : memref<128x128xbf16, #tpu.memory_space<vmem>>, vector<128x128xbf16>
    %c0_i32 = arith.constant 0 : i32
    %c8_i32 = arith.constant 8 : i32
    %21 = arith.muli %c0_i32, %c8_i32 : i32
    %22 = tpu.assume_multiple %21, 8 : i32
    %23 = arith.index_cast %22 : i32 to index
    %c0_24 = arith.constant 0 : index
    %24 = vector.load %arg10[%23, %c0_24] : memref<8x128xf32, #tpu.memory_space<vmem>>, vector<8x128xf32>
    %25 = arith.index_cast %c0_i32 : i32 to index
    %c0_25 = arith.constant 0 : index
    %c0_26 = arith.constant 0 : index
    %26 = vector.load %arg11[%25, %c0_25, %c0_26] : memref<1x128x8xf32, #tpu.memory_space<vmem>>, vector<1x128x8xf32>
    %27 = vector.shape_cast %26 : vector<1x128x8xf32> to vector<128x8xf32>
    %28 = vector.extract_strided_slice %27 {offsets = [0, 0], sizes = [128, 1], strides = [1, 1]} : vector<128x8xf32> to vector<128x1xf32>
    %29 = vector.extract_strided_slice %24 {offsets = [0, 0], sizes = [1, 128], strides = [1, 1]} : vector<8x128xf32> to vector<1x128xf32>
    %30 = vector.broadcast %28 : vector<128x1xf32> to vector<128x128xf32>
    %31 = arith.mulf %30, %19 : vector<128x128xf32>
    %32 = vector.broadcast %29 : vector<1x128xf32> to vector<128x128xf32>
    %33 = arith.mulf %31, %32 : vector<128x128xf32>
    %34 = arith.truncf %33 : vector<128x128xf32> to vector<128x128xbf16>
    %cst_27 = arith.constant dense<0.000000e+00> : vector<128x128xf32>
    %35 = tpu.matmul %34, %20, %cst_27 {dimension_numbers = #tpu.dot_dimension_numbers<[1], [0], [0], [1], [0, 0, 1, 1], [], []>} : vector<128x128xbf16>, vector<128x128xbf16>, vector<128x128xf32> -> vector<128x128xf32>
    %36 = arith.mulf %2, %35 : vector<128x128xf32>
    %cst_28 = arith.constant dense<0.000000e+00> : vector<128xf32>
    %37 = vector.multi_reduction <add>, %36, %cst_28 [0] : vector<128x128xf32> to vector<128xf32>
    %38 = vector.shape_cast %37 : vector<128xf32> to vector<1x128xf32>
    %39 = vector.extract_strided_slice %27 {offsets = [0, 1], sizes = [128, 1], strides = [1, 1]} : vector<128x8xf32> to vector<128x1xf32>
    %40 = vector.extract_strided_slice %24 {offsets = [1, 0], sizes = [1, 128], strides = [1, 1]} : vector<8x128xf32> to vector<1x128xf32>
    %41 = vector.broadcast %39 : vector<128x1xf32> to vector<128x128xf32>
    %42 = arith.mulf %41, %19 : vector<128x128xf32>
    %43 = vector.broadcast %40 : vector<1x128xf32> to vector<128x128xf32>
    %44 = arith.mulf %42, %43 : vector<128x128xf32>
    %45 = arith.truncf %44 : vector<128x128xf32> to vector<128x128xbf16>
    %cst_29 = arith.constant dense<0.000000e+00> : vector<128x128xf32>
    %46 = tpu.matmul %45, %20, %cst_29 {dimension_numbers = #tpu.dot_dimension_numbers<[1], [0], [0], [1], [0, 0, 1, 1], [], []>} : vector<128x128xbf16>, vector<128x128xbf16>, vector<128x128xf32> -> vector<128x128xf32>
    %47 = arith.mulf %2, %46 : vector<128x128xf32>
    %cst_30 = arith.constant dense<0.000000e+00> : vector<128xf32>
    %48 = vector.multi_reduction <add>, %47, %cst_30 [0] : vector<128x128xf32> to vector<128xf32>
    %49 = vector.shape_cast %48 : vector<128xf32> to vector<1x128xf32>
    %50 = vector.extract_strided_slice %27 {offsets = [0, 2], sizes = [128, 1], strides = [1, 1]} : vector<128x8xf32> to vector<128x1xf32>
    %51 = vector.extract_strided_slice %24 {offsets = [2, 0], sizes = [1, 128], strides = [1, 1]} : vector<8x128xf32> to vector<1x128xf32>
    %52 = vector.broadcast %50 : vector<128x1xf32> to vector<128x128xf32>
    %53 = arith.mulf %52, %19 : vector<128x128xf32>
    %54 = vector.broadcast %51 : vector<1x128xf32> to vector<128x128xf32>
    %55 = arith.mulf %53, %54 : vector<128x128xf32>
    %56 = arith.truncf %55 : vector<128x128xf32> to vector<128x128xbf16>
    %cst_31 = arith.constant dense<0.000000e+00> : vector<128x128xf32>
    %57 = tpu.matmul %56, %20, %cst_31 {dimension_numbers = #tpu.dot_dimension_numbers<[1], [0], [0], [1], [0, 0, 1, 1], [], []>} : vector<128x128xbf16>, vector<128x128xbf16>, vector<128x128xf32> -> vector<128x128xf32>
    %58 = arith.mulf %2, %57 : vector<128x128xf32>
    %cst_32 = arith.constant dense<0.000000e+00> : vector<128xf32>
    %59 = vector.multi_reduction <add>, %58, %cst_32 [0] : vector<128x128xf32> to vector<128xf32>
    %60 = vector.shape_cast %59 : vector<128xf32> to vector<1x128xf32>
    %61 = vector.extract_strided_slice %27 {offsets = [0, 3], sizes = [128, 1], strides = [1, 1]} : vector<128x8xf32> to vector<128x1xf32>
    %62 = vector.extract_strided_slice %24 {offsets = [3, 0], sizes = [1, 128], strides = [1, 1]} : vector<8x128xf32> to vector<1x128xf32>
    %63 = vector.broadcast %61 : vector<128x1xf32> to vector<128x128xf32>
    %64 = arith.mulf %63, %19 : vector<128x128xf32>
    %65 = vector.broadcast %62 : vector<1x128xf32> to vector<128x128xf32>
    %66 = arith.mulf %64, %65 : vector<128x128xf32>
    %67 = arith.truncf %66 : vector<128x128xf32> to vector<128x128xbf16>
    %cst_33 = arith.constant dense<0.000000e+00> : vector<128x128xf32>
    %68 = tpu.matmul %67, %20, %cst_33 {dimension_numbers = #tpu.dot_dimension_numbers<[1], [0], [0], [1], [0, 0, 1, 1], [], []>} : vector<128x128xbf16>, vector<128x128xbf16>, vector<128x128xf32> -> vector<128x128xf32>
    %69 = arith.mulf %2, %68 : vector<128x128xf32>
    %cst_34 = arith.constant dense<0.000000e+00> : vector<128xf32>
    %70 = vector.multi_reduction <add>, %69, %cst_34 [0] : vector<128x128xf32> to vector<128xf32>
    %71 = vector.shape_cast %70 : vector<128xf32> to vector<1x128xf32>
    %72 = vector.extract_strided_slice %27 {offsets = [0, 4], sizes = [128, 1], strides = [1, 1]} : vector<128x8xf32> to vector<128x1xf32>
    %73 = vector.extract_strided_slice %24 {offsets = [4, 0], sizes = [1, 128], strides = [1, 1]} : vector<8x128xf32> to vector<1x128xf32>
    %74 = vector.broadcast %72 : vector<128x1xf32> to vector<128x128xf32>
    %75 = arith.mulf %74, %19 : vector<128x128xf32>
    %76 = vector.broadcast %73 : vector<1x128xf32> to vector<128x128xf32>
    %77 = arith.mulf %75, %76 : vector<128x128xf32>
    %78 = arith.truncf %77 : vector<128x128xf32> to vector<128x128xbf16>
    %cst_35 = arith.constant dense<0.000000e+00> : vector<128x128xf32>
    %79 = tpu.matmul %78, %20, %cst_35 {dimension_numbers = #tpu.dot_dimension_numbers<[1], [0], [0], [1], [0, 0, 1, 1], [], []>} : vector<128x128xbf16>, vector<128x128xbf16>, vector<128x128xf32> -> vector<128x128xf32>
    %80 = arith.mulf %2, %79 : vector<128x128xf32>
    %cst_36 = arith.constant dense<0.000000e+00> : vector<128xf32>
    %81 = vector.multi_reduction <add>, %80, %cst_36 [0] : vector<128x128xf32> to vector<128xf32>
    %82 = vector.shape_cast %81 : vector<128xf32> to vector<1x128xf32>
    %83 = vector.extract_strided_slice %27 {offsets = [0, 5], sizes = [128, 1], strides = [1, 1]} : vector<128x8xf32> to vector<128x1xf32>
    %84 = vector.extract_strided_slice %24 {offsets = [5, 0], sizes = [1, 128], strides = [1, 1]} : vector<8x128xf32> to vector<1x128xf32>
    %85 = vector.broadcast %83 : vector<128x1xf32> to vector<128x128xf32>
    %86 = arith.mulf %85, %19 : vector<128x128xf32>
    %87 = vector.broadcast %84 : vector<1x128xf32> to vector<128x128xf32>
    %88 = arith.mulf %86, %87 : vector<128x128xf32>
    %89 = arith.truncf %88 : vector<128x128xf32> to vector<128x128xbf16>
    %cst_37 = arith.constant dense<0.000000e+00> : vector<128x128xf32>
    %90 = tpu.matmul %89, %20, %cst_37 {dimension_numbers = #tpu.dot_dimension_numbers<[1], [0], [0], [1], [0, 0, 1, 1], [], []>} : vector<128x128xbf16>, vector<128x128xbf16>, vector<128x128xf32> -> vector<128x128xf32>
    %91 = arith.mulf %2, %90 : vector<128x128xf32>
    %cst_38 = arith.constant dense<0.000000e+00> : vector<128xf32>
    %92 = vector.multi_reduction <add>, %91, %cst_38 [0] : vector<128x128xf32> to vector<128xf32>
    %93 = vector.shape_cast %92 : vector<128xf32> to vector<1x128xf32>
    %94 = vector.extract_strided_slice %27 {offsets = [0, 6], sizes = [128, 1], strides = [1, 1]} : vector<128x8xf32> to vector<128x1xf32>
    %95 = vector.extract_strided_slice %24 {offsets = [6, 0], sizes = [1, 128], strides = [1, 1]} : vector<8x128xf32> to vector<1x128xf32>
    %96 = vector.broadcast %94 : vector<128x1xf32> to vector<128x128xf32>
    %97 = arith.mulf %96, %19 : vector<128x128xf32>
    %98 = vector.broadcast %95 : vector<1x128xf32> to vector<128x128xf32>
    %99 = arith.mulf %97, %98 : vector<128x128xf32>
    %100 = arith.truncf %99 : vector<128x128xf32> to vector<128x128xbf16>
    %cst_39 = arith.constant dense<0.000000e+00> : vector<128x128xf32>
    %101 = tpu.matmul %100, %20, %cst_39 {dimension_numbers = #tpu.dot_dimension_numbers<[1], [0], [0], [1], [0, 0, 1, 1], [], []>} : vector<128x128xbf16>, vector<128x128xbf16>, vector<128x128xf32> -> vector<128x128xf32>
    %102 = arith.mulf %2, %101 : vector<128x128xf32>
    %cst_40 = arith.constant dense<0.000000e+00> : vector<128xf32>
    %103 = vector.multi_reduction <add>, %102, %cst_40 [0] : vector<128x128xf32> to vector<128xf32>
    %104 = vector.shape_cast %103 : vector<128xf32> to vector<1x128xf32>
    %105 = vector.extract_strided_slice %27 {offsets = [0, 7], sizes = [128, 1], strides = [1, 1]} : vector<128x8xf32> to vector<128x1xf32>
    %106 = vector.extract_strided_slice %24 {offsets = [7, 0], sizes = [1, 128], strides = [1, 1]} : vector<8x128xf32> to vector<1x128xf32>
    %107 = vector.broadcast %105 : vector<128x1xf32> to vector<128x128xf32>
    %108 = arith.mulf %107, %19 : vector<128x128xf32>
    %109 = vector.broadcast %106 : vector<1x128xf32> to vector<128x128xf32>
    %110 = arith.mulf %108, %109 : vector<128x128xf32>
    %111 = arith.truncf %110 : vector<128x128xf32> to vector<128x128xbf16>
    %cst_41 = arith.constant dense<0.000000e+00> : vector<128x128xf32>
    %112 = tpu.matmul %111, %20, %cst_41 {dimension_numbers = #tpu.dot_dimension_numbers<[1], [0], [0], [1], [0, 0, 1, 1], [], []>} : vector<128x128xbf16>, vector<128x128xbf16>, vector<128x128xf32> -> vector<128x128xf32>
    %113 = arith.mulf %2, %112 : vector<128x128xf32>
    %cst_42 = arith.constant dense<0.000000e+00> : vector<128xf32>
    %114 = vector.multi_reduction <add>, %113, %cst_42 [0] : vector<128x128xf32> to vector<128xf32>
    %115 = vector.shape_cast %114 : vector<128xf32> to vector<1x128xf32>
    %116 = tpu.concatenate %38, %49, %60, %71, %82, %93, %104, %115 in 0 : vector<1x128xf32>, vector<1x128xf32>, vector<1x128xf32>, vector<1x128xf32>, vector<1x128xf32>, vector<1x128xf32>, vector<1x128xf32>, vector<1x128xf32> -> vector<8x128xf32>
    %117 = arith.index_cast %22 : i32 to index
    %c0_43 = arith.constant 0 : index
    %118 = vector.load %arg12[%117, %c0_43] : memref<8x128xf32, #tpu.memory_space<vmem>>, vector<8x128xf32>
    %119 = arith.addf %118, %116 : vector<8x128xf32>
    %120 = arith.index_cast %22 : i32 to index
    %c0_44 = arith.constant 0 : index
    %121 = vector.load %arg9[%120, %c0_44] : memref<8x128xf32, #tpu.memory_space<vmem>>, vector<8x128xf32>
    tpu.vector_store %arg9[%120, %c0_44], %119 {strides = array<i32>} : memref<8x128xf32, #tpu.memory_space<vmem>>, vector<8x128xf32>,
    %c1_i32 = arith.constant 1 : i32
    return
  }
  func.func @transform_0(%arg0: i32) -> (i32, i32) {
    %c0_i32 = arith.constant 0 : i32
    %c0_i32_0 = arith.constant 0 : i32
    return %arg0, %c0_i32 : i32, i32
  }
  func.func @transform_1(%arg0: i32) -> (i32, i32) {
    %c0_i32 = arith.constant 0 : i32
    %c0_i32_0 = arith.constant 0 : i32
    %c0_i32_1 = arith.constant 0 : i32
    return %c0_i32, %c0_i32_0 : i32, i32
  }
  func.func @transform_2(%arg0: i32) -> (i32, i32) {
    %c0_i32 = arith.constant 0 : i32
    %c0_i32_0 = arith.constant 0 : i32
    %c0_i32_1 = arith.constant 0 : i32
    return %c0_i32, %c0_i32_0 : i32, i32
  }
  func.func @transform_3(%arg0: i32) -> (i32, i32) {
    %c0_i32 = arith.constant 0 : i32
    %c0_i32_0 = arith.constant 0 : i32
    %c0_i32_1 = arith.constant 0 : i32
    return %c0_i32, %c0_i32_0 : i32, i32
  }
  func.func @transform_4(%arg0: i32) -> (i32, i32) {
    %c0_i32 = arith.constant 0 : i32
    %c0_i32_0 = arith.constant 0 : i32
    %c0_i32_1 = arith.constant 0 : i32
    return %c0_i32, %c0_i32_0 : i32, i32
  }
  func.func @transform_5(%arg0: i32) -> (i32, i32) {
    %c0_i32 = arith.constant 0 : i32
    %c0_i32_0 = arith.constant 0 : i32
    %c0_i32_1 = arith.constant 0 : i32
    return %c0_i32, %c0_i32_0 : i32, i32
  }
  func.func @transform_6(%arg0: i32) -> (i32, i32) {
    %c0_i32 = arith.constant 0 : i32
    %c0_i32_0 = arith.constant 0 : i32
    %c0_i32_1 = arith.constant 0 : i32
    return %c0_i32, %c0_i32_0 : i32, i32
  }
  func.func @transform_7(%arg0: i32) -> (i32, i32) {
    %c0_i32 = arith.constant 0 : i32
    %c0_i32_0 = arith.constant 0 : i32
    %c0_i32_1 = arith.constant 0 : i32
    return %c0_i32, %c0_i32_0 : i32, i32
  }
  func.func @transform_8(%arg0: i32) -> (i32, i32) {
    %c0_i32 = arith.constant 0 : i32
    %c0_i32_0 = arith.constant 0 : i32
    return %arg0, %c0_i32 : i32, i32
  }
}

</mosaic_0001>

<llo_original>
// kernel: tpu_custom_call.1
$region0: #{tpu_custom_call.1}
  #allocation0 [shape = 'u32[]', space=smem, size = 0x4, offset = 0x4, fixed_abs, tag = 'smem constant byte address 0x4 - core index']
  #allocation1 [shape = 'u32[144,128]{1,0:T(1,128)}', space=vmem, size = 0x12000, scoped, tag = 'internal scratch']
  #allocation2 [shape = 'f32[8,128]{1,0:T(8,128)}', space=vmem, size = 0x1000, scoped, tag = 'scratch operand']
  #allocation3 [shape = 'f32[1,128,8]{2,1,0:T(8,128)}', space=vmem, size = 0x10000, scoped, tag = 'scratch operand']
  #allocation4 [shape = 'f32[8,128]{1,0:T(8,128)}', space=vmem, size = 0x1000, scoped, tag = 'scratch operand']
  %s0 = inlined_call_operand.hbm [shape: f32[8,128], index: 0, kind: input, shape index: {}]
  %s1 = inlined_call_operand.hbm [shape: f32[128,128], index: 1, kind: input, shape index: {}]
  %s2 = inlined_call_operand.hbm [shape: bf16[128,128], index: 2, kind: input, shape index: {}]
  %s3 = inlined_call_operand.hbm [shape: f32[128,128], index: 3, kind: input, shape index: {}]
  %s4 = inlined_call_operand.hbm [shape: bf16[128,128], index: 4, kind: input, shape index: {}]
  %s5 = inlined_call_operand.vmem [shape: f32[1,128], index: 5, kind: input, shape index: {}]
  %s6 = inlined_call_operand.vmem [shape: f32[1,128], index: 6, kind: input, shape index: {}]
  %s7 = inlined_call_operand.hbm [shape: f32[128,128], index: 7, kind: input, shape index: {}]
  %s8 = inlined_call_operand.hbm [shape: f32[8,128], index: 8, kind: output, shape index: {}]
  %s9 = sld [smem:[#allocation0]]
  $region66: #{tpu_custom_call.1} parent=0
    _
  %s11 = ssub.s32 1, %s9
  %s12 = scalar_select 0, %s11, %s9
  $region1: #{tpu_custom_call.1} parent=0
    #allocation5 [shape = 'u8[4096]{0}', space=vmem, size = 0x1000, scoped, tag = 'input window, operand 0, single buffered']
    #allocation6 [shape = 's32[1]{0}', space=sflag, size = 0x4, scoped, tag = 'scoped memory for tpu_custom_call.1']
    #allocation7 [shape = 's32[1]{0}', space=sflag, size = 0x4, scoped, tag = 'scoped memory for tpu_custom_call.1']
    #allocation8 [shape = 'u8[65536]{0}', space=vmem, size = 0x10000, scoped, tag = 'input window, operand 1, single buffered']
    #allocation9 [shape = 's32[1]{0}', space=sflag, size = 0x4, scoped, tag = 'scoped memory for tpu_custom_call.1']
    #allocation10 [shape = 'u8[32768]{0}', space=vmem, size = 0x8000, scoped, tag = 'input window, operand 2, single buffered']
    #allocation11 [shape = 'u8[65536]{0}', space=vmem, size = 0x10000, scoped, tag = 'input window, operand 3, single buffered']
    #allocation12 [shape = 's32[1]{0}', space=sflag, size = 0x4, scoped, tag = 'scoped memory for tpu_custom_call.1']
    #allocation13 [shape = 'u8[32768]{0}', space=vmem, size = 0x8000, scoped, tag = 'input window, operand 4, single buffered']
    #allocation14 [shape = 'u8[65536]{0}', space=vmem, size = 0x10000, scoped, tag = 'input window, operand 7, single buffered']
    #allocation15 [shape = 's32[1]{0}', space=sflag, size = 0x4, scoped, tag = 'scoped memory for tpu_custom_call.1']
    #allocation16 [shape = 'u8[4096]{0}', space=vmem, size = 0x1000, scoped, tag = 'output window, operand 0, single buffered']
    %13 = vsyncpa [#allocation6], 0
    %14 = vsyncpa [#allocation9], 0
    %15 = vsyncpa [#allocation12], 0
    %16 = vsyncpa [#allocation15], 0
    %17 = vsyncpa [#allocation7], 0
    // Predicated region
    $region2: #{tpu_custom_call.1} parent=1 // pred_check
      _
    $region3: #{tpu_custom_call.1} parent=1 // pred_check_branch
      %19 = sbr.rel (0) target = $region5
    $region4: #{tpu_custom_call.1} parent=1 // pred_region
      %s21 = ssub.s32 128, 128
      %22 = vsyncadd [#allocation6], %s21
      %s24 = sshll.u32 [#allocation5], 4
      %s25 = int_to_ptr.vmem [resolvable:$true] %s24
      %27 = dma.hbm_to_vmem [thread:$0]  %s0, 128, %s25, [#allocation6]
    $region5: #{tpu_custom_call.1} parent=1 // pred_fallthru
      _
    // Predicated region
    $region6: #{tpu_custom_call.1} parent=1 // pred_check
      _
    $region7: #{tpu_custom_call.1} parent=1 // pred_check_branch
      %29 = sbr.rel (0) target = $region9
    $region8: #{tpu_custom_call.1} parent=1 // pred_region
      %s31 = ssub.s32 2048, 2048
      %32 = vsyncadd [#allocation9], %s31
      %s33 = sshll.u32 [#allocation8], 4
      %s34 = int_to_ptr.vmem [resolvable:$true] %s33
      %39 = dma.hbm_to_vmem [thread:$0]  %s1, 2048, %s34, [#allocation9], 128, 128, 8
    $region9: #{tpu_custom_call.1} parent=1 // pred_fallthru
      _
    // Predicated region
    $region10: #{tpu_custom_call.1} parent=1 // pred_check
      _
    $region11: #{tpu_custom_call.1} parent=1 // pred_check_branch
      %41 = sbr.rel (0) target = $region13
    $region12: #{tpu_custom_call.1} parent=1 // pred_region
      %s43 = ssub.s32 1024, 1024
      %44 = vsyncadd [#allocation9], %s43
      %s45 = sshll.u32 [#allocation10], 4
      %s46 = int_to_ptr.vmem [resolvable:$true] %s45
      %51 = dma.hbm_to_vmem [thread:$0]  %s2, 1024, %s46, [#allocation9], 64, 64, 4
    $region13: #{tpu_custom_call.1} parent=1 // pred_fallthru
      _
    // Predicated region
    $region14: #{tpu_custom_call.1} parent=1 // pred_check
      _
    $region15: #{tpu_custom_call.1} parent=1 // pred_check_branch
      %53 = sbr.rel (0) target = $region17
    $region16: #{tpu_custom_call.1} parent=1 // pred_region
      %s55 = ssub.s32 2048, 2048
      %56 = vsyncadd [#allocation12], %s55
      %s57 = sshll.u32 [#allocation11], 4
      %s58 = int_to_ptr.vmem [resolvable:$true] %s57
      %63 = dma.hbm_to_vmem [thread:$0]  %s3, 2048, %s58, [#allocation12], 128, 128, 8
    $region17: #{tpu_custom_call.1} parent=1 // pred_fallthru
      _
    // Predicated region
    $region18: #{tpu_custom_call.1} parent=1 // pred_check
      _
    $region19: #{tpu_custom_call.1} parent=1 // pred_check_branch
      %65 = sbr.rel (0) target = $region21
    $region20: #{tpu_custom_call.1} parent=1 // pred_region
      %s67 = ssub.s32 1024, 1024
      %68 = vsyncadd [#allocation12], %s67
      %s69 = sshll.u32 [#allocation13], 4
      %s70 = int_to_ptr.vmem [resolvable:$true] %s69
      %75 = dma.hbm_to_vmem [thread:$0]  %s4, 1024, %s70, [#allocation12], 64, 64, 4
    $region21: #{tpu_custom_call.1} parent=1 // pred_fallthru
      _
    // Predicated region
    $region22: #{tpu_custom_call.1} parent=1 // pred_check
      _
    $region23: #{tpu_custom_call.1} parent=1 // pred_check_branch
      %77 = sbr.rel (0) target = $region25
    $region24: #{tpu_custom_call.1} parent=1 // pred_region
      _
    $region25: #{tpu_custom_call.1} parent=1 // pred_fallthru
      _
    // Predicated region
    $region26: #{tpu_custom_call.1} parent=1 // pred_check
      _
    $region27: #{tpu_custom_call.1} parent=1 // pred_check_branch
      %79 = sbr.rel (0) target = $region29
    $region28: #{tpu_custom_call.1} parent=1 // pred_region
      _
    $region29: #{tpu_custom_call.1} parent=1 // pred_fallthru
      _
    // Predicated region
    $region30: #{tpu_custom_call.1} parent=1 // pred_check
      _
    $region31: #{tpu_custom_call.1} parent=1 // pred_check_branch
      %81 = sbr.rel (0) target = $region33
    $region32: #{tpu_custom_call.1} parent=1 // pred_region
      %s83 = ssub.s32 2048, 2048
      %84 = vsyncadd [#allocation15], %s83
      %s85 = sshll.u32 [#allocation14], 4
      %s86 = int_to_ptr.vmem [resolvable:$true] %s85
      %91 = dma.hbm_to_vmem [thread:$0]  %s7, 2048, %s86, [#allocation15], 128, 128, 8
    $region33: #{tpu_custom_call.1} parent=1 // pred_fallthru
      _
    // Predicated region
    $region34: #{tpu_custom_call.1} parent=1 // pred_check
      _
    $region35: #{tpu_custom_call.1} parent=1 // pred_check_branch
      %93 = sbr.rel (0) target = $region37
    $region36: #{tpu_custom_call.1} parent=1 // pred_region
      %94 = dma.done [#allocation6], 128
    $region37: #{tpu_custom_call.1} parent=1 // pred_fallthru
      _
    // Predicated region
    $region38: #{tpu_custom_call.1} parent=1 // pred_check
      _
    $region39: #{tpu_custom_call.1} parent=1 // pred_check_branch
      %96 = sbr.rel (0) target = $region41
    $region40: #{tpu_custom_call.1} parent=1 // pred_region
      %97 = dma.done [#allocation9], 2048
    $region41: #{tpu_custom_call.1} parent=1 // pred_fallthru
      _
    // Predicated region
    $region42: #{tpu_custom_call.1} parent=1 // pred_check
      _
    $region43: #{tpu_custom_call.1} parent=1 // pred_check_branch
      %99 = sbr.rel (0) target = $region45
    $region44: #{tpu_custom_call.1} parent=1 // pred_region
      %100 = dma.done [#allocation9], 1024
    $region45: #{tpu_custom_call.1} parent=1 // pred_fallthru
      _
    // Predicated region
    $region46: #{tpu_custom_call.1} parent=1 // pred_check
      _
    $region47: #{tpu_custom_call.1} parent=1 // pred_check_branch
      %102 = sbr.rel (0) target = $region49
    $region48: #{tpu_custom_call.1} parent=1 // pred_region
      %103 = dma.done [#allocation12], 2048
    $region49: #{tpu_custom_call.1} parent=1 // pred_fallthru
      _
    // Predicated region
    $region50: #{tpu_custom_call.1} parent=1 // pred_check
      _
    $region51: #{tpu_custom_call.1} parent=1 // pred_check_branch
      %105 = sbr.rel (0) target = $region53
    $region52: #{tpu_custom_call.1} parent=1 // pred_region
      %106 = dma.done [#allocation12], 1024
    $region53: #{tpu_custom_call.1} parent=1 // pred_fallthru
      _
    // Predicated region
    $region54: #{tpu_custom_call.1} parent=1 // pred_check
      _
    $region55: #{tpu_custom_call.1} parent=1 // pred_check_branch
      %108 = sbr.rel (0) target = $region57
    $region56: #{tpu_custom_call.1} parent=1 // pred_region
      %109 = dma.done [#allocation15], 2048
    $region57: #{tpu_custom_call.1} parent=1 // pred_fallthru
      _
    %v111 = vld [vmem:[#allocation5] sm:$0xff]
    %v112 = vld [vmem:[#allocation8] sm:$0xff]
    %v113 = vld [vmem:[#allocation8 + $0x8] sm:$0xff]
    %v114 = vld [vmem:[#allocation8 + $0x10] sm:$0xff]
    %v115 = vld [vmem:[#allocation8 + $0x18] sm:$0xff]
    %v116 = vld [vmem:[#allocation8 + $0x20] sm:$0xff]
    %v117 = vld [vmem:[#allocation8 + $0x28] sm:$0xff]
    %v118 = vld [vmem:[#allocation8 + $0x30] sm:$0xff]
    %v119 = vld [vmem:[#allocation8 + $0x38] sm:$0xff]
    %v120 = vld [vmem:[#allocation8 + $0x40] sm:$0xff]
    %v121 = vld [vmem:[#allocation8 + $0x48] sm:$0xff]
    %v122 = vld [vmem:[#allocation8 + $0x50] sm:$0xff]
    %v123 = vld [vmem:[#allocation8 + $0x58] sm:$0xff]
    %v124 = vld [vmem:[#allocation8 + $0x60] sm:$0xff]
    %v125 = vld [vmem:[#allocation8 + $0x68] sm:$0xff]
    %v126 = vld [vmem:[#allocation8 + $0x70] sm:$0xff]
    %v127 = vld [vmem:[#allocation8 + $0x78] sm:$0xff]
    %v128 = vld [vmem:[#allocation11] sm:$0xff]
    %v129 = vld [vmem:[#allocation11 + $0x8] sm:$0xff]
    %v130 = vld [vmem:[#allocation11 + $0x10] sm:$0xff]
    %v131 = vld [vmem:[#allocation11 + $0x18] sm:$0xff]
    %v132 = vld [vmem:[#allocation11 + $0x20] sm:$0xff]
    %v133 = vld [vmem:[#allocation11 + $0x28] sm:$0xff]
    %v134 = vld [vmem:[#allocation11 + $0x30] sm:$0xff]
    %v135 = vld [vmem:[#allocation11 + $0x38] sm:$0xff]
    %v136 = vld [vmem:[#allocation11 + $0x40] sm:$0xff]
    %v137 = vld [vmem:[#allocation11 + $0x48] sm:$0xff]
    %v138 = vld [vmem:[#allocation11 + $0x50] sm:$0xff]
    %v139 = vld [vmem:[#allocation11 + $0x58] sm:$0xff]
    %v140 = vld [vmem:[#allocation11 + $0x60] sm:$0xff]
    %v141 = vld [vmem:[#allocation11 + $0x68] sm:$0xff]
    %v142 = vld [vmem:[#allocation11 + $0x70] sm:$0xff]
    %v143 = vld [vmem:[#allocation11 + $0x78] sm:$0xff]
    %144 = vmatprep.subr.mxu0 0.0
    %145 = vmatpush1.msra.mxu0 %v112
    %146 = vmatprep.subr.mxu0 0.0
    %147 = vmatpush1.msra.mxu0 %v113
    %148 = vmatprep.subr.mxu0 0.0
    %149 = vmatpush1.msra.mxu0 %v114
    %150 = vmatprep.subr.mxu0 0.0
    %151 = vmatpush1.msra.mxu0 %v115
    %152 = vmatprep.subr.mxu0 0.0
    %153 = vmatpush1.msra.mxu0 %v116
    %154 = vmatprep.subr.mxu0 0.0
    %155 = vmatpush1.msra.mxu0 %v117
    %156 = vmatprep.subr.mxu0 0.0
    %157 = vmatpush1.msra.mxu0 %v118
    %158 = vmatprep.subr.mxu0 0.0
    %159 = vmatpush1.msra.mxu0 %v119
    %160 = vmatprep.subr.mxu0 0.0
    %161 = vmatpush1.msra.mxu0 %v120
    %162 = vmatprep.subr.mxu0 0.0
    %163 = vmatpush1.msra.mxu0 %v121
    %164 = vmatprep.subr.mxu0 0.0
    %165 = vmatpush1.msra.mxu0 %v122
    %166 = vmatprep.subr.mxu0 0.0
    %167 = vmatpush1.msra.mxu0 %v123
    %168 = vmatprep.subr.mxu0 0.0
    %169 = vmatpush1.msra.mxu0 %v124
    %170 = vmatprep.subr.mxu0 0.0
    %171 = vmatpush1.msra.mxu0 %v125
    %172 = vmatprep.subr.mxu0 0.0
    %173 = vmatpush1.msra.mxu0 %v126
    %174 = vmatprep.subr.mxu0 0.0
    %175 = vmatpush1.msra.mxu0 %v127
    %176 = vmatprep.subr.mxu0 0.0
    %177 = vmatpush1.msra.mxu0 0.0
    %178 = vmatprep.subr.mxu0 0.0
    %179 = vmatpush1.msra.mxu0 0.0
    %180 = vmatprep.subr.mxu0 0.0
    %181 = vmatpush1.msra.mxu0 0.0
    %182 = vmatprep.subr.mxu0 0.0
    %183 = vmatpush1.msra.mxu0 0.0
    %184 = vmatprep.subr.mxu0 0.0
    %185 = vmatpush1.msra.mxu0 0.0
    %186 = vmatprep.subr.mxu0 0.0
    %187 = vmatpush1.msra.mxu0 0.0
    %188 = vmatprep.subr.mxu0 0.0
    %189 = vmatpush1.msra.mxu0 0.0
    %190 = vmatprep.subr.mxu0 0.0
    %191 = vmatpush1.msra.mxu0 0.0
    %192 = vmatprep.subr.mxu0 0.0
    %193 = vmatpush1.msra.mxu0 0.0
    %194 = vmatprep.subr.mxu0 0.0
    %195 = vmatpush1.msra.mxu0 0.0
    %196 = vmatprep.subr.mxu0 0.0
    %197 = vmatpush1.msra.mxu0 0.0
    %198 = vmatprep.subr.mxu0 0.0
    %199 = vmatpush1.msra.mxu0 0.0
    %200 = vmatprep.subr.mxu0 0.0
    %201 = vmatpush1.msra.mxu0 0.0
    %202 = vmatprep.subr.mxu0 0.0
    %203 = vmatpush1.msra.mxu0 0.0
    %204 = vmatprep.subr.mxu0 0.0
    %205 = vmatpush1.msra.mxu0 0.0
    %206 = vmatprep.subr.mxu0 0.0
    %207 = vmatpush1.msra.mxu0 0.0
    %208 = vmatprep.mubr.f32.mxu0 0.0
    %209 = vmatmul.mubr.f32.gmra.mrb[0].mxu0 %v111
    %v210 = vpop.f32.mrb[0].mxu0
    %v211 = vadd.f32 0.0, %v210
    %v212 = vpop.f32.mrb[0].mxu0
    %213 = vdwg.mxu0
    %214 = vst [vmem:[#allocation2] sm:$0xff] %v211
    %215 = vmatprep.subr.mxu0 0.0
    %216 = vmatpush1.xpose.msra.mxu0 %v111
    %217 = vmatprep.subr.mxu0 0.0
    %218 = vmatpush1.xpose.msra.mxu0 0.0
    %219 = vmatprep.subr.mxu0 0.0
    %220 = vmatpush1.xpose.msra.mxu0 0.0
    %221 = vmatprep.subr.mxu0 0.0
    %222 = vmatpush1.xpose.msra.mxu0 0.0
    %223 = vmatprep.subr.mxu0 0.0
    %224 = vmatpush1.xpose.msra.mxu0 0.0
    %225 = vmatprep.subr.mxu0 0.0
    %226 = vmatpush1.xpose.msra.mxu0 0.0
    %227 = vmatprep.subr.mxu0 0.0
    %228 = vmatpush1.xpose.msra.mxu0 0.0
    %229 = vmatprep.subr.mxu0 0.0
    %230 = vmatpush1.xpose.msra.mxu0 0.0
    %231 = vmatprep.subr.mxu0 0.0
    %232 = vmatpush1.xpose.msra.mxu0 0.0
    %233 = vmatprep.subr.mxu0 0.0
    %234 = vmatpush1.xpose.msra.mxu0 0.0
    %235 = vmatprep.subr.mxu0 0.0
    %236 = vmatpush1.xpose.msra.mxu0 0.0
    %237 = vmatprep.subr.mxu0 0.0
    %238 = vmatpush1.xpose.msra.mxu0 0.0
    %239 = vmatprep.subr.mxu0 0.0
    %240 = vmatpush1.xpose.msra.mxu0 0.0
    %241 = vmatprep.subr.mxu0 0.0
    %242 = vmatpush1.xpose.msra.mxu0 0.0
    %243 = vmatprep.subr.mxu0 0.0
    %244 = vmatpush1.xpose.msra.mxu0 0.0
    %245 = vmatprep.subr.mxu0 0.0
    %246 = vmatpush1.xpose.msra.mxu0 0.0
    %247 = vmatprep.subr.mxu0 0.0
    %248 = vmatpush1.xpose.msra.mxu0 0.0
    %249 = vmatprep.subr.mxu0 0.0
    %250 = vmatpush1.xpose.msra.mxu0 0.0
    %251 = vmatprep.subr.mxu0 0.0
    %252 = vmatpush1.xpose.msra.mxu0 0.0
    %253 = vmatprep.subr.mxu0 0.0
    %254 = vmatpush1.xpose.msra.mxu0 0.0
    %255 = vmatprep.subr.mxu0 0.0
    %256 = vmatpush1.xpose.msra.mxu0 0.0
    %257 = vmatprep.subr.mxu0 0.0
    %258 = vmatpush1.xpose.msra.mxu0 0.0
    %259 = vmatprep.subr.mxu0 0.0
    %260 = vmatpush1.xpose.msra.mxu0 0.0
    %261 = vmatprep.subr.mxu0 0.0
    %262 = vmatpush1.xpose.msra.mxu0 0.0
    %263 = vmatprep.subr.mxu0 0.0
    %264 = vmatpush1.xpose.msra.mxu0 0.0
    %265 = vmatprep.subr.mxu0 0.0
    %266 = vmatpush1.xpose.msra.mxu0 0.0
    %267 = vmatprep.subr.mxu0 0.0
    %268 = vmatpush1.xpose.msra.mxu0 0.0
    %269 = vmatprep.subr.mxu0 0.0
    %270 = vmatpush1.xpose.msra.mxu0 0.0
    %271 = vmatprep.subr.mxu0 0.0
    %272 = vmatpush1.xpose.msra.mxu0 0.0
    %273 = vmatprep.subr.mxu0 0.0
    %274 = vmatpush1.xpose.msra.mxu0 0.0
    %275 = vmatprep.subr.mxu0 0.0
    %276 = vmatpush1.xpose.msra.mxu0 0.0
    %277 = vmatprep.subr.mxu0 0.0
    %278 = vmatpush1.xpose.msra.mxu0 0.0
    %279 = vmatprep.mubr.f32.mxu0 0.0
    %280 = vmatmul.mubr.f32.gmra.mrb[0].mxu0 %v128
    %v281 = vpop.f32.mrb[0].mxu0
    %v282 = vadd.f32 0.0, %v281
    %v283 = vpop.f32.mrb[0].mxu0
    %284 = vmatprep.mubr.f32.mxu0 0.0
    %285 = vmatmul.mubr.f32.gmra.mrb[0].mxu0 %v129
    %v286 = vpop.f32.mrb[0].mxu0
    %v287 = vadd.f32 0.0, %v286
    %v288 = vpop.f32.mrb[0].mxu0
    %289 = vmatprep.mubr.f32.mxu0 0.0
    %290 = vmatmul.mubr.f32.gmra.mrb[0].mxu0 %v130
    %v291 = vpop.f32.mrb[0].mxu0
    %v292 = vadd.f32 0.0, %v291
    %v293 = vpop.f32.mrb[0].mxu0
    %294 = vmatprep.mubr.f32.mxu0 0.0
    %295 = vmatmul.mubr.f32.gmra.mrb[0].mxu0 %v131
    %v296 = vpop.f32.mrb[0].mxu0
    %v297 = vadd.f32 0.0, %v296
    %v298 = vpop.f32.mrb[0].mxu0
    %299 = vmatprep.mubr.f32.mxu0 0.0
    %300 = vmatmul.mubr.f32.gmra.mrb[0].mxu0 %v132
    %v301 = vpop.f32.mrb[0].mxu0
    %v302 = vadd.f32 0.0, %v301
    %v303 = vpop.f32.mrb[0].mxu0
    %304 = vmatprep.mubr.f32.mxu0 0.0
    %305 = vmatmul.mubr.f32.gmra.mrb[0].mxu0 %v133
    %v306 = vpop.f32.mrb[0].mxu0
    %v307 = vadd.f32 0.0, %v306
    %v308 = vpop.f32.mrb[0].mxu0
    %309 = vmatprep.mubr.f32.mxu0 0.0
    %310 = vmatmul.mubr.f32.gmra.mrb[0].mxu0 %v134
    %v311 = vpop.f32.mrb[0].mxu0
    %v312 = vadd.f32 0.0, %v311
    %v313 = vpop.f32.mrb[0].mxu0
    %314 = vmatprep.mubr.f32.mxu0 0.0
    %315 = vmatmul.mubr.f32.gmra.mrb[0].mxu0 %v135
    %v316 = vpop.f32.mrb[0].mxu0
    %v317 = vadd.f32 0.0, %v316
    %v318 = vpop.f32.mrb[0].mxu0
    %319 = vmatprep.mubr.f32.mxu0 0.0
    %320 = vmatmul.mubr.f32.gmra.mrb[0].mxu0 %v136
    %v321 = vpop.f32.mrb[0].mxu0
    %v322 = vadd.f32 0.0, %v321
    %v323 = vpop.f32.mrb[0].mxu0
    %324 = vmatprep.mubr.f32.mxu0 0.0
    %325 = vmatmul.mubr.f32.gmra.mrb[0].mxu0 %v137
    %v326 = vpop.f32.mrb[0].mxu0
    %v327 = vadd.f32 0.0, %v326
    %v328 = vpop.f32.mrb[0].mxu0
    %329 = vmatprep.mubr.f32.mxu0 0.0
    %330 = vmatmul.mubr.f32.gmra.mrb[0].mxu0 %v138
    %v331 = vpop.f32.mrb[0].mxu0
    %v332 = vadd.f32 0.0, %v331
    %v333 = vpop.f32.mrb[0].mxu0
    %334 = vmatprep.mubr.f32.mxu0 0.0
    %335 = vmatmul.mubr.f32.gmra.mrb[0].mxu0 %v139
    %v336 = vpop.f32.mrb[0].mxu0
    %v337 = vadd.f32 0.0, %v336
    %v338 = vpop.f32.mrb[0].mxu0
    %339 = vmatprep.mubr.f32.mxu0 0.0
    %340 = vmatmul.mubr.f32.gmra.mrb[0].mxu0 %v140
    %v341 = vpop.f32.mrb[0].mxu0
    %v342 = vadd.f32 0.0, %v341
    %v343 = vpop.f32.mrb[0].mxu0
    %344 = vmatprep.mubr.f32.mxu0 0.0
    %345 = vmatmul.mubr.f32.gmra.mrb[0].mxu0 %v141
    %v346 = vpop.f32.mrb[0].mxu0
    %v347 = vadd.f32 0.0, %v346
    %v348 = vpop.f32.mrb[0].mxu0
    %349 = vmatprep.mubr.f32.mxu0 0.0
    %350 = vmatmul.mubr.f32.gmra.mrb[0].mxu0 %v142
    %v351 = vpop.f32.mrb[0].mxu0
    %v352 = vadd.f32 0.0, %v351
    %v353 = vpop.f32.mrb[0].mxu0
    %354 = vmatprep.mubr.f32.mxu0 0.0
    %355 = vmatmul.mubr.f32.gmra.mrb[0].mxu0 %v143
    %v356 = vpop.f32.mrb[0].mxu0
    %v357 = vadd.f32 0.0, %v356
    %v358 = vpop.f32.mrb[0].mxu0
    %359 = vdwg.mxu0
    %vm360 = vcmask 64512
    %361 = vst.msk [vmem:[#allocation3] sm:$0xff] %vm360, %v282
    %362 = vst.msk [vmem:[#allocation3 + $0x8] sm:$0xff] %vm360, %v287
    %363 = vst.msk [vmem:[#allocation3 + $0x10] sm:$0xff] %vm360, %v292
    %364 = vst.msk [vmem:[#allocation3 + $0x18] sm:$0xff] %vm360, %v297
    %365 = vst.msk [vmem:[#allocation3 + $0x20] sm:$0xff] %vm360, %v302
    %366 = vst.msk [vmem:[#allocation3 + $0x28] sm:$0xff] %vm360, %v307
    %367 = vst.msk [vmem:[#allocation3 + $0x30] sm:$0xff] %vm360, %v312
    %368 = vst.msk [vmem:[#allocation3 + $0x38] sm:$0xff] %vm360, %v317
    %369 = vst.msk [vmem:[#allocation3 + $0x40] sm:$0xff] %vm360, %v322
    %370 = vst.msk [vmem:[#allocation3 + $0x48] sm:$0xff] %vm360, %v327
    %371 = vst.msk [vmem:[#allocation3 + $0x50] sm:$0xff] %vm360, %v332
    %372 = vst.msk [vmem:[#allocation3 + $0x58] sm:$0xff] %vm360, %v337
    %373 = vst.msk [vmem:[#allocation3 + $0x60] sm:$0xff] %vm360, %v342
    %374 = vst.msk [vmem:[#allocation3 + $0x68] sm:$0xff] %vm360, %v347
    %375 = vst.msk [vmem:[#allocation3 + $0x70] sm:$0xff] %vm360, %v352
    %376 = vst.msk [vmem:[#allocation3 + $0x78] sm:$0xff] %vm360, %v357
    %v377 = vld [vmem:[%s6] sm:$0x1]
    %v379 = vlaneseq
    %v380 = vshrl.u32 %v379, 7
    %v381 = vsub.s32 0, %v380
    %v382 = vrot.slane %v377, %v381
    %v384 = vmul.f32 %v382, %v211
    %v385 = vpack.c.bf16 %v384, %v384
    %v386 = vld [vmem:[#allocation10] sm:$0xf]
    %v387 = vld [vmem:[#allocation10 + $0x4] sm:$0xf]
    %v388 = vld [vmem:[#allocation10 + $0x8] sm:$0xf]
    %v389 = vld [vmem:[#allocation10 + $0xc] sm:$0xf]
    %v390 = vld [vmem:[#allocation10 + $0x10] sm:$0xf]
    %v391 = vld [vmem:[#allocation10 + $0x14] sm:$0xf]
    %v392 = vld [vmem:[#allocation10 + $0x18] sm:$0xf]
    %v393 = vld [vmem:[#allocation10 + $0x1c] sm:$0xf]
    %v394 = vld [vmem:[#allocation10 + $0x20] sm:$0xf]
    %v395 = vld [vmem:[#allocation10 + $0x24] sm:$0xf]
    %v396 = vld [vmem:[#allocation10 + $0x28] sm:$0xf]
    %v397 = vld [vmem:[#allocation10 + $0x2c] sm:$0xf]
    %v398 = vld [vmem:[#allocation10 + $0x30] sm:$0xf]
    %v399 = vld [vmem:[#allocation10 + $0x34] sm:$0xf]
    %v400 = vld [vmem:[#allocation10 + $0x38] sm:$0xf]
    %v401 = vld [vmem:[#allocation10 + $0x3c] sm:$0xf]
    %v418 = vunpack.c.l.b16 %v386
    %v419 = vunpack.c.l.b16 %v387
    %v420 = vunpack.c.l.b16 %v388
    %v421 = vunpack.c.l.b16 %v389
    %v422 = vunpack.c.l.b16 %v390
    %v423 = vunpack.c.l.b16 %v391
    %v424 = vunpack.c.l.b16 %v392
    %v425 = vunpack.c.l.b16 %v393
    %v426 = vunpack.c.l.b16 %v394
    %v427 = vunpack.c.l.b16 %v395
    %v428 = vunpack.c.l.b16 %v396
    %v429 = vunpack.c.l.b16 %v397
    %v430 = vunpack.c.l.b16 %v398
    %v431 = vunpack.c.l.b16 %v399
    %v432 = vunpack.c.l.b16 %v400
    %v433 = vunpack.c.l.b16 %v401
    %v434 = vpack.c.b16 %v419, %v418
    %v435 = vpack.c.b16 %v421, %v420
    %v436 = vpack.c.b16 %v423, %v422
    %v437 = vpack.c.b16 %v425, %v424
    %v438 = vpack.c.b16 %v427, %v426
    %v439 = vpack.c.b16 %v429, %v428
    %v440 = vpack.c.b16 %v431, %v430
    %v441 = vpack.c.b16 %v433, %v432
    %450 = vmatprep.subr.bf16.mxu0 0
    %451 = vmatpush1.bf16.msra.mxu0 %v434
    %452 = vmatprep.subr.bf16.mxu0 0
    %453 = vmatpush1.bf16.msra.mxu0 %v435
    %454 = vmatprep.subr.bf16.mxu0 0
    %455 = vmatpush1.bf16.msra.mxu0 %v436
    %456 = vmatprep.subr.bf16.mxu0 0
    %457 = vmatpush1.bf16.msra.mxu0 %v437
    %458 = vmatprep.subr.bf16.mxu0 0
    %459 = vmatpush1.bf16.msra.mxu0 %v438
    %460 = vmatprep.subr.bf16.mxu0 0
    %461 = vmatpush1.bf16.msra.mxu0 %v439
    %462 = vmatprep.subr.bf16.mxu0 0
    %463 = vmatpush1.bf16.msra.mxu0 %v440
    %464 = vmatprep.subr.bf16.mxu0 0
    %465 = vmatpush1.bf16.msra.mxu0 %v441
    %466 = vmatprep.subr.bf16.mxu0 0
    %467 = vmatpush1.bf16.msra.mxu0 0
    %468 = vmatprep.subr.bf16.mxu0 0
    %469 = vmatpush1.bf16.msra.mxu0 0
    %470 = vmatprep.subr.bf16.mxu0 0
    %471 = vmatpush1.bf16.msra.mxu0 0
    %472 = vmatprep.subr.bf16.mxu0 0
    %473 = vmatpush1.bf16.msra.mxu0 0
    %474 = vmatprep.subr.bf16.mxu0 0
    %475 = vmatpush1.bf16.msra.mxu0 0
    %476 = vmatprep.subr.bf16.mxu0 0
    %477 = vmatpush1.bf16.msra.mxu0 0
    %478 = vmatprep.subr.bf16.mxu0 0
    %479 = vmatpush1.bf16.msra.mxu0 0
    %480 = vmatprep.subr.bf16.mxu0 0
    %481 = vmatpush1.bf16.msra.mxu0 0
    %482 = vmatprep.mubr.bf16.mxu0 0
    %483 = vmatmul.mubr.bf16.gmra.mrb[0].mxu0 %v385
    %v484 = vpop.f32.mrb[0].mxu0
    %v485 = vadd.f32 0.0, %v484
    %v486 = vpop.f32.mrb[0].mxu0
    %v487 = vpop.f32.mrb[0].mxu0
    %v488 = vpop.f32.mrb[0].mxu0
    %489 = vdwg.mxu0
    %v490 = vld [vmem:[%s5] sm:$0x1]
    %v492 = vlaneseq
    %v493 = vshrl.u32 %v492, 7
    %v494 = vsub.s32 0, %v493
    %v495 = vrot.slane %v490, %v494
    %v497 = vadd.f32 %v495, %v485
    %498 = vst [vmem:[#allocation4] sm:$0xff] %v497
    %v499 = vld [vmem:[#allocation14] sm:$0xff]
    %v500 = vld [vmem:[#allocation14 + $0x8] sm:$0xff]
    %v501 = vld [vmem:[#allocation14 + $0x10] sm:$0xff]
    %v502 = vld [vmem:[#allocation14 + $0x18] sm:$0xff]
    %v503 = vld [vmem:[#allocation14 + $0x20] sm:$0xff]
    %v504 = vld [vmem:[#allocation14 + $0x28] sm:$0xff]
    %v505 = vld [vmem:[#allocation14 + $0x30] sm:$0xff]
    %v506 = vld [vmem:[#allocation14 + $0x38] sm:$0xff]
    %v507 = vld [vmem:[#allocation14 + $0x40] sm:$0xff]
    %v508 = vld [vmem:[#allocation14 + $0x48] sm:$0xff]
    %v509 = vld [vmem:[#allocation14 + $0x50] sm:$0xff]
    %v510 = vld [vmem:[#allocation14 + $0x58] sm:$0xff]
    %v511 = vld [vmem:[#allocation14 + $0x60] sm:$0xff]
    %v512 = vld [vmem:[#allocation14 + $0x68] sm:$0xff]
    %v513 = vld [vmem:[#allocation14 + $0x70] sm:$0xff]
    %v514 = vld [vmem:[#allocation14 + $0x78] sm:$0xff]
    %v515 = vld [vmem:[#allocation13] sm:$0xf]
    %v516 = vld [vmem:[#allocation13 + $0x4] sm:$0xf]
    %v517 = vld [vmem:[#allocation13 + $0x8] sm:$0xf]
    %v518 = vld [vmem:[#allocation13 + $0xc] sm:$0xf]
    %v519 = vld [vmem:[#allocation13 + $0x10] sm:$0xf]
    %v520 = vld [vmem:[#allocation13 + $0x14] sm:$0xf]
    %v521 = vld [vmem:[#allocation13 + $0x18] sm:$0xf]
    %v522 = vld [vmem:[#allocation13 + $0x1c] sm:$0xf]
    %v523 = vld [vmem:[#allocation13 + $0x20] sm:$0xf]
    %v524 = vld [vmem:[#allocation13 + $0x24] sm:$0xf]
    %v525 = vld [vmem:[#allocation13 + $0x28] sm:$0xf]
    %v526 = vld [vmem:[#allocation13 + $0x2c] sm:$0xf]
    %v527 = vld [vmem:[#allocation13 + $0x30] sm:$0xf]
    %v528 = vld [vmem:[#allocation13 + $0x34] sm:$0xf]
    %v529 = vld [vmem:[#allocation13 + $0x38] sm:$0xf]
    %v530 = vld [vmem:[#allocation13 + $0x3c] sm:$0xf]
    %v531 = vld [vmem:[#allocation2] sm:$0xff]
    %v532 = vld [vmem:[#allocation3] sm:$0xff]
    %v533 = vld [vmem:[#allocation3 + $0x8] sm:$0xff]
    %v534 = vld [vmem:[#allocation3 + $0x10] sm:$0xff]
    %v535 = vld [vmem:[#allocation3 + $0x18] sm:$0xff]
    %v536 = vld [vmem:[#allocation3 + $0x20] sm:$0xff]
    %v537 = vld [vmem:[#allocation3 + $0x28] sm:$0xff]
    %v538 = vld [vmem:[#allocation3 + $0x30] sm:$0xff]
    %v539 = vld [vmem:[#allocation3 + $0x38] sm:$0xff]
    %v540 = vld [vmem:[#allocation3 + $0x40] sm:$0xff]
    %v541 = vld [vmem:[#allocation3 + $0x48] sm:$0xff]
    %v542 = vld [vmem:[#allocation3 + $0x50] sm:$0xff]
    %v543 = vld [vmem:[#allocation3 + $0x58] sm:$0xff]
    %v544 = vld [vmem:[#allocation3 + $0x60] sm:$0xff]
    %v545 = vld [vmem:[#allocation3 + $0x68] sm:$0xff]
    %v546 = vld [vmem:[#allocation3 + $0x70] sm:$0xff]
    %v547 = vld [vmem:[#allocation3 + $0x78] sm:$0xff]
    %549 = vset.pattern.permute.xlu0 0
    %550 = vperm.xlu0 %549, %v532
    %v551 = vpop.permute.xlu0 %550
    %554 = vset.pattern.permute.xlu0 0
    %555 = vperm.xlu0 %554, %v533
    %v556 = vpop.permute.xlu0 %555
    %559 = vset.pattern.permute.xlu0 0
    %560 = vperm.xlu0 %559, %v534
    %v561 = vpop.permute.xlu0 %560
    %564 = vset.pattern.permute.xlu0 0
    %565 = vperm.xlu0 %564, %v535
    %v566 = vpop.permute.xlu0 %565
    %569 = vset.pattern.permute.xlu0 0
    %570 = vperm.xlu0 %569, %v536
    %v571 = vpop.permute.xlu0 %570
    %574 = vset.pattern.permute.xlu0 0
    %575 = vperm.xlu0 %574, %v537
    %v576 = vpop.permute.xlu0 %575
    %579 = vset.pattern.permute.xlu0 0
    %580 = vperm.xlu0 %579, %v538
    %v581 = vpop.permute.xlu0 %580
    %584 = vset.pattern.permute.xlu0 0
    %585 = vperm.xlu0 %584, %v539
    %v586 = vpop.permute.xlu0 %585
    %589 = vset.pattern.permute.xlu0 0
    %590 = vperm.xlu0 %589, %v540
    %v591 = vpop.permute.xlu0 %590
    %594 = vset.pattern.permute.xlu0 0
    %595 = vperm.xlu0 %594, %v541
    %v596 = vpop.permute.xlu0 %595
    %599 = vset.pattern.permute.xlu0 0
    %600 = vperm.xlu0 %599, %v542
    %v601 = vpop.permute.xlu0 %600
    %604 = vset.pattern.permute.xlu0 0
    %605 = vperm.xlu0 %604, %v543
    %v606 = vpop.permute.xlu0 %605
    %609 = vset.pattern.permute.xlu0 0
    %610 = vperm.xlu0 %609, %v544
    %v611 = vpop.permute.xlu0 %610
    %614 = vset.pattern.permute.xlu0 0
    %615 = vperm.xlu0 %614, %v545
    %v616 = vpop.permute.xlu0 %615
    %619 = vset.pattern.permute.xlu0 0
    %620 = vperm.xlu0 %619, %v546
    %v621 = vpop.permute.xlu0 %620
    %624 = vset.pattern.permute.xlu0 0
    %625 = vperm.xlu0 %624, %v547
    %v626 = vpop.permute.xlu0 %625
    %v628 = vmul.f32 %v551, %v499
    %v629 = vmul.f32 %v556, %v500
    %v630 = vmul.f32 %v561, %v501
    %v631 = vmul.f32 %v566, %v502
    %v632 = vmul.f32 %v571, %v503
    %v633 = vmul.f32 %v576, %v504
    %v634 = vmul.f32 %v581, %v505
    %v635 = vmul.f32 %v586, %v506
    %v636 = vmul.f32 %v591, %v507
    %v637 = vmul.f32 %v596, %v508
    %v638 = vmul.f32 %v601, %v509
    %v639 = vmul.f32 %v606, %v510
    %v640 = vmul.f32 %v611, %v511
    %v641 = vmul.f32 %v616, %v512
    %v642 = vmul.f32 %v621, %v513
    %v643 = vmul.f32 %v626, %v514
    %v644 = vlaneseq
    %v645 = vshrl.u32 %v644, 7
    %v646 = vsub.s32 0, %v645
    %v647 = vrot.slane %v531, %v646
    %v648 = vmul.f32 %v628, %v647
    %v649 = vmul.f32 %v629, %v647
    %v650 = vmul.f32 %v630, %v647
    %v651 = vmul.f32 %v631, %v647
    %v652 = vmul.f32 %v632, %v647
    %v653 = vmul.f32 %v633, %v647
    %v654 = vmul.f32 %v634, %v647
    %v655 = vmul.f32 %v635, %v647
    %v656 = vmul.f32 %v636, %v647
    %v657 = vmul.f32 %v637, %v647
    %v658 = vmul.f32 %v638, %v647
    %v659 = vmul.f32 %v639, %v647
    %v660 = vmul.f32 %v640, %v647
    %v661 = vmul.f32 %v641, %v647
    %v662 = vmul.f32 %v642, %v647
    %v663 = vmul.f32 %v643, %v647
    %v664 = vpack.c.bf16 %v649, %v648
    %v665 = vpack.c.bf16 %v651, %v650
    %v666 = vpack.c.bf16 %v653, %v652
    %v667 = vpack.c.bf16 %v655, %v654
    %v668 = vpack.c.bf16 %v657, %v656
    %v669 = vpack.c.bf16 %v659, %v658
    %v670 = vpack.c.bf16 %v661, %v660
    %v671 = vpack.c.bf16 %v663, %v662
    %v688 = vunpack.c.l.b16 %v515
    %v689 = vunpack.c.l.b16 %v516
    %v690 = vunpack.c.l.b16 %v517
    %v691 = vunpack.c.l.b16 %v518
    %v692 = vunpack.c.l.b16 %v519
    %v693 = vunpack.c.l.b16 %v520
    %v694 = vunpack.c.l.b16 %v521
    %v695 = vunpack.c.l.b16 %v522
    %v696 = vunpack.c.l.b16 %v523
    %v697 = vunpack.c.l.b16 %v524
    %v698 = vunpack.c.l.b16 %v525
    %v699 = vunpack.c.l.b16 %v526
    %v700 = vunpack.c.l.b16 %v527
    %v701 = vunpack.c.l.b16 %v528
    %v702 = vunpack.c.l.b16 %v529
    %v703 = vunpack.c.l.b16 %v530
    %v704 = vpack.c.b16 %v689, %v688
    %v705 = vpack.c.b16 %v691, %v690
    %v706 = vpack.c.b16 %v693, %v692
    %v707 = vpack.c.b16 %v695, %v694
    %v708 = vpack.c.b16 %v697, %v696
    %v709 = vpack.c.b16 %v699, %v698
    %v710 = vpack.c.b16 %v701, %v700
    %v711 = vpack.c.b16 %v703, %v702
    %720 = vmatprep.subr.bf16.mxu0 0
    %721 = vmatpush1.bf16.msra.mxu0 %v704
    %722 = vmatprep.subr.bf16.mxu0 0
    %723 = vmatpush1.bf16.msra.mxu0 %v705
    %724 = vmatprep.subr.bf16.mxu0 0
    %725 = vmatpush1.bf16.msra.mxu0 %v706
    %726 = vmatprep.subr.bf16.mxu0 0
    %727 = vmatpush1.bf16.msra.mxu0 %v707
    %728 = vmatprep.subr.bf16.mxu0 0
    %729 = vmatpush1.bf16.msra.mxu0 %v708
    %730 = vmatprep.subr.bf16.mxu0 0
    %731 = vmatpush1.bf16.msra.mxu0 %v709
    %732 = vmatprep.subr.bf16.mxu0 0
    %733 = vmatpush1.bf16.msra.mxu0 %v710
    %734 = vmatprep.subr.bf16.mxu0 0
    %735 = vmatpush1.bf16.msra.mxu0 %v711
    %736 = vmatprep.subr.bf16.mxu0 0
    %737 = vmatpush1.bf16.msra.mxu0 0
    %738 = vmatprep.subr.bf16.mxu0 0
    %739 = vmatpush1.bf16.msra.mxu0 0
    %740 = vmatprep.subr.bf16.mxu0 0
    %741 = vmatpush1.bf16.msra.mxu0 0
    %742 = vmatprep.subr.bf16.mxu0 0
    %743 = vmatpush1.bf16.msra.mxu0 0
    %744 = vmatprep.subr.bf16.mxu0 0
    %745 = vmatpush1.bf16.msra.mxu0 0
    %746 = vmatprep.subr.bf16.mxu0 0
    %747 = vmatpush1.bf16.msra.mxu0 0
    %748 = vmatprep.subr.bf16.mxu0 0
    %749 = vmatpush1.bf16.msra.mxu0 0
    %750 = vmatprep.subr.bf16.mxu0 0
    %751 = vmatpush1.bf16.msra.mxu0 0
    %752 = vmatprep.mubr.bf16.mxu0 0
    %753 = vmatmul.mubr.bf16.gmra.mrb[0].mxu0 %v664
    %v754 = vpop.f32.mrb[0].mxu0
    %v755 = vadd.f32 0.0, %v754
    %v756 = vpop.f32.mrb[0].mxu0
    %v757 = vpop.f32.mrb[0].mxu0
    %v758 = vadd.f32 0.0, %v757
    %v759 = vpop.f32.mrb[0].mxu0
    %760 = vmatprep.mubr.bf16.mxu0 0
    %761 = vmatmul.mubr.bf16.gmra.mrb[0].mxu0 %v665
    %v762 = vpop.f32.mrb[0].mxu0
    %v763 = vadd.f32 0.0, %v762
    %v764 = vpop.f32.mrb[0].mxu0
    %v765 = vpop.f32.mrb[0].mxu0
    %v766 = vadd.f32 0.0, %v765
    %v767 = vpop.f32.mrb[0].mxu0
    %768 = vmatprep.mubr.bf16.mxu0 0
    %769 = vmatmul.mubr.bf16.gmra.mrb[0].mxu0 %v666
    %v770 = vpop.f32.mrb[0].mxu0
    %v771 = vadd.f32 0.0, %v770
    %v772 = vpop.f32.mrb[0].mxu0
    %v773 = vpop.f32.mrb[0].mxu0
    %v774 = vadd.f32 0.0, %v773
    %v775 = vpop.f32.mrb[0].mxu0
    %776 = vmatprep.mubr.bf16.mxu0 0
    %777 = vmatmul.mubr.bf16.gmra.mrb[0].mxu0 %v667
    %v778 = vpop.f32.mrb[0].mxu0
    %v779 = vadd.f32 0.0, %v778
    %v780 = vpop.f32.mrb[0].mxu0
    %v781 = vpop.f32.mrb[0].mxu0
    %v782 = vadd.f32 0.0, %v781
    %v783 = vpop.f32.mrb[0].mxu0
    %784 = vmatprep.mubr.bf16.mxu0 0
    %785 = vmatmul.mubr.bf16.gmra.mrb[0].mxu0 %v668
    %v786 = vpop.f32.mrb[0].mxu0
    %v787 = vadd.f32 0.0, %v786
    %v788 = vpop.f32.mrb[0].mxu0
    %v789 = vpop.f32.mrb[0].mxu0
    %v790 = vadd.f32 0.0, %v789
    %v791 = vpop.f32.mrb[0].mxu0
    %792 = vmatprep.mubr.bf16.mxu0 0
    %793 = vmatmul.mubr.bf16.gmra.mrb[0].mxu0 %v669
    %v794 = vpop.f32.mrb[0].mxu0
    %v795 = vadd.f32 0.0, %v794
    %v796 = vpop.f32.mrb[0].mxu0
    %v797 = vpop.f32.mrb[0].mxu0
    %v798 = vadd.f32 0.0, %v797
    %v799 = vpop.f32.mrb[0].mxu0
    %800 = vmatprep.mubr.bf16.mxu0 0
    %801 = vmatmul.mubr.bf16.gmra.mrb[0].mxu0 %v670
    %v802 = vpop.f32.mrb[0].mxu0
    %v803 = vadd.f32 0.0, %v802
    %v804 = vpop.f32.mrb[0].mxu0
    %v805 = vpop.f32.mrb[0].mxu0
    %v806 = vadd.f32 0.0, %v805
    %v807 = vpop.f32.mrb[0].mxu0
    %808 = vmatprep.mubr.bf16.mxu0 0
    %809 = vmatmul.mubr.bf16.gmra.mrb[0].mxu0 %v671
    %v810 = vpop.f32.mrb[0].mxu0
    %v811 = vadd.f32 0.0, %v810
    %v812 = vpop.f32.mrb[0].mxu0
    %v813 = vpop.f32.mrb[0].mxu0
    %v814 = vadd.f32 0.0, %v813
    %v815 = vpop.f32.mrb[0].mxu0
    %816 = vdwg.mxu0
    %v817 = vmul.f32 %v128, %v755
    %v818 = vmul.f32 %v129, %v758
    %v819 = vmul.f32 %v130, %v763
    %v820 = vmul.f32 %v131, %v766
    %v821 = vmul.f32 %v132, %v771
    %v822 = vmul.f32 %v133, %v774
    %v823 = vmul.f32 %v134, %v779
    %v824 = vmul.f32 %v135, %v782
    %v825 = vmul.f32 %v136, %v787
    %v826 = vmul.f32 %v137, %v790
    %v827 = vmul.f32 %v138, %v795
    %v828 = vmul.f32 %v139, %v798
    %v829 = vmul.f32 %v140, %v803
    %v830 = vmul.f32 %v141, %v806
    %v831 = vmul.f32 %v142, %v811
    %v832 = vmul.f32 %v143, %v814
    %v833 = vadd.f32 %v817, %v818
    %v834 = vadd.f32 %v833, %v819
    %v835 = vadd.f32 %v834, %v820
    %v836 = vadd.f32 %v835, %v821
    %v837 = vadd.f32 %v836, %v822
    %v838 = vadd.f32 %v837, %v823
    %v839 = vadd.f32 %v838, %v824
    %v840 = vadd.f32 %v839, %v825
    %v841 = vadd.f32 %v840, %v826
    %v842 = vadd.f32 %v841, %v827
    %v843 = vadd.f32 %v842, %v828
    %v844 = vadd.f32 %v843, %v829
    %v845 = vadd.f32 %v844, %v830
    %v846 = vadd.f32 %v845, %v831
    %v847 = vadd.f32 %v846, %v832
    %v848 = vrot.slane %v847, 4
    %v849 = vadd.f32 %v847, %v848
    %v850 = vrot.slane %v849, 2
    %v851 = vadd.f32 %v849, %v850
    %v852 = vrot.slane %v851, 1
    %v853 = vadd.f32 %v851, %v852
    %854 = vset.pattern.permute.xlu0 1
    %855 = vperm.xlu0 %854, %v532
    %v856 = vpop.permute.xlu0 %855
    %858 = vset.pattern.permute.xlu0 1
    %859 = vperm.xlu0 %858, %v533
    %v860 = vpop.permute.xlu0 %859
    %862 = vset.pattern.permute.xlu0 1
    %863 = vperm.xlu0 %862, %v534
    %v864 = vpop.permute.xlu0 %863
    %866 = vset.pattern.permute.xlu0 1
    %867 = vperm.xlu0 %866, %v535
    %v868 = vpop.permute.xlu0 %867
    %870 = vset.pattern.permute.xlu0 1
    %871 = vperm.xlu0 %870, %v536
    %v872 = vpop.permute.xlu0 %871
    %874 = vset.pattern.permute.xlu0 1
    %875 = vperm.xlu0 %874, %v537
    %v876 = vpop.permute.xlu0 %875
    %878 = vset.pattern.permute.xlu0 1
    %879 = vperm.xlu0 %878, %v538
    %v880 = vpop.permute.xlu0 %879
    %882 = vset.pattern.permute.xlu0 1
    %883 = vperm.xlu0 %882, %v539
    %v884 = vpop.permute.xlu0 %883
    %886 = vset.pattern.permute.xlu0 1
    %887 = vperm.xlu0 %886, %v540
    %v888 = vpop.permute.xlu0 %887
    %890 = vset.pattern.permute.xlu0 1
    %891 = vperm.xlu0 %890, %v541
    %v892 = vpop.permute.xlu0 %891
    %894 = vset.pattern.permute.xlu0 1
    %895 = vperm.xlu0 %894, %v542
    %v896 = vpop.permute.xlu0 %895
    %898 = vset.pattern.permute.xlu0 1
    %899 = vperm.xlu0 %898, %v543
    %v900 = vpop.permute.xlu0 %899
    %902 = vset.pattern.permute.xlu0 1
    %903 = vperm.xlu0 %902, %v544
    %v904 = vpop.permute.xlu0 %903
    %906 = vset.pattern.permute.xlu0 1
    %907 = vperm.xlu0 %906, %v545
    %v908 = vpop.permute.xlu0 %907
    %910 = vset.pattern.permute.xlu0 1
    %911 = vperm.xlu0 %910, %v546
    %v912 = vpop.permute.xlu0 %911
    %914 = vset.pattern.permute.xlu0 1
    %915 = vperm.xlu0 %914, %v547
    %v916 = vpop.permute.xlu0 %915
    %v918 = vmul.f32 %v856, %v499
    %v919 = vmul.f32 %v860, %v500
    %v920 = vmul.f32 %v864, %v501
    %v921 = vmul.f32 %v868, %v502
    %v922 = vmul.f32 %v872, %v503
    %v923 = vmul.f32 %v876, %v504
    %v924 = vmul.f32 %v880, %v505
    %v925 = vmul.f32 %v884, %v506
    %v926 = vmul.f32 %v888, %v507
    %v927 = vmul.f32 %v892, %v508
    %v928 = vmul.f32 %v896, %v509
    %v929 = vmul.f32 %v900, %v510
    %v930 = vmul.f32 %v904, %v511
    %v931 = vmul.f32 %v908, %v512
    %v932 = vmul.f32 %v912, %v513
    %v933 = vmul.f32 %v916, %v514
    %v934 = vlaneseq
    %v935 = vshrl.u32 %v934, 7
    %v936 = vsub.s32 1, %v935
    %v937 = vrot.slane %v531, %v936
    %v938 = vmul.f32 %v918, %v937
    %v939 = vmul.f32 %v919, %v937
    %v940 = vmul.f32 %v920, %v937
    %v941 = vmul.f32 %v921, %v937
    %v942 = vmul.f32 %v922, %v937
    %v943 = vmul.f32 %v923, %v937
    %v944 = vmul.f32 %v924, %v937
    %v945 = vmul.f32 %v925, %v937
    %v946 = vmul.f32 %v926, %v937
    %v947 = vmul.f32 %v927, %v937
    %v948 = vmul.f32 %v928, %v937
    %v949 = vmul.f32 %v929, %v937
    %v950 = vmul.f32 %v930, %v937
    %v951 = vmul.f32 %v931, %v937
    %v952 = vmul.f32 %v932, %v937
    %v953 = vmul.f32 %v933, %v937
    %v954 = vpack.c.bf16 %v939, %v938
    %v955 = vpack.c.bf16 %v941, %v940
    %v956 = vpack.c.bf16 %v943, %v942
    %v957 = vpack.c.bf16 %v945, %v944
    %v958 = vpack.c.bf16 %v947, %v946
    %v959 = vpack.c.bf16 %v949, %v948
    %v960 = vpack.c.bf16 %v951, %v950
    %v961 = vpack.c.bf16 %v953, %v952
    %962 = vmatprep.subr.bf16.mxu0 0
    %963 = vmatpush1.bf16.msra.mxu0 %v704
    %964 = vmatprep.subr.bf16.mxu0 0
    %965 = vmatpush1.bf16.msra.mxu0 %v705
    %966 = vmatprep.subr.bf16.mxu0 0
    %967 = vmatpush1.bf16.msra.mxu0 %v706
    %968 = vmatprep.subr.bf16.mxu0 0
    %969 = vmatpush1.bf16.msra.mxu0 %v707
    %970 = vmatprep.subr.bf16.mxu0 0
    %971 = vmatpush1.bf16.msra.mxu0 %v708
    %972 = vmatprep.subr.bf16.mxu0 0
    %973 = vmatpush1.bf16.msra.mxu0 %v709
    %974 = vmatprep.subr.bf16.mxu0 0
    %975 = vmatpush1.bf16.msra.mxu0 %v710
    %976 = vmatprep.subr.bf16.mxu0 0
    %977 = vmatpush1.bf16.msra.mxu0 %v711
    %978 = vmatprep.subr.bf16.mxu0 0
    %979 = vmatpush1.bf16.msra.mxu0 0
    %980 = vmatprep.subr.bf16.mxu0 0
    %981 = vmatpush1.bf16.msra.mxu0 0
    %982 = vmatprep.subr.bf16.mxu0 0
    %983 = vmatpush1.bf16.msra.mxu0 0
    %984 = vmatprep.subr.bf16.mxu0 0
    %985 = vmatpush1.bf16.msra.mxu0 0
    %986 = vmatprep.subr.bf16.mxu0 0
    %987 = vmatpush1.bf16.msra.mxu0 0
    %988 = vmatprep.subr.bf16.mxu0 0
    %989 = vmatpush1.bf16.msra.mxu0 0
    %990 = vmatprep.subr.bf16.mxu0 0
    %991 = vmatpush1.bf16.msra.mxu0 0
    %992 = vmatprep.subr.bf16.mxu0 0
    %993 = vmatpush1.bf16.msra.mxu0 0
    %994 = vmatprep.mubr.bf16.mxu0 0
    %995 = vmatmul.mubr.bf16.gmra.mrb[0].mxu0 %v954
    %v996 = vpop.f32.mrb[0].mxu0
    %v997 = vadd.f32 0.0, %v996
    %v998 = vpop.f32.mrb[0].mxu0
    %v999 = vpop.f32.mrb[0].mxu0
    %v1000 = vadd.f32 0.0, %v999
    %v1001 = vpop.f32.mrb[0].mxu0
    %1002 = vmatprep.mubr.bf16.mxu0 0
    %1003 = vmatmul.mubr.bf16.gmra.mrb[0].mxu0 %v955
    %v1004 = vpop.f32.mrb[0].mxu0
    %v1005 = vadd.f32 0.0, %v1004
    %v1006 = vpop.f32.mrb[0].mxu0
    %v1007 = vpop.f32.mrb[0].mxu0
    %v1008 = vadd.f32 0.0, %v1007
    %v1009 = vpop.f32.mrb[0].mxu0
    %1010 = vmatprep.mubr.bf16.mxu0 0
    %1011 = vmatmul.mubr.bf16.gmra.mrb[0].mxu0 %v956
    %v1012 = vpop.f32.mrb[0].mxu0
    %v1013 = vadd.f32 0.0, %v1012
    %v1014 = vpop.f32.mrb[0].mxu0
    %v1015 = vpop.f32.mrb[0].mxu0
    %v1016 = vadd.f32 0.0, %v1015
    %v1017 = vpop.f32.mrb[0].mxu0
    %1018 = vmatprep.mubr.bf16.mxu0 0
    %1019 = vmatmul.mubr.bf16.gmra.mrb[0].mxu0 %v957
    %v1020 = vpop.f32.mrb[0].mxu0
    %v1021 = vadd.f32 0.0, %v1020
    %v1022 = vpop.f32.mrb[0].mxu0
    %v1023 = vpop.f32.mrb[0].mxu0
    %v1024 = vadd.f32 0.0, %v1023
    %v1025 = vpop.f32.mrb[0].mxu0
    %1026 = vmatprep.mubr.bf16.mxu0 0
    %1027 = vmatmul.mubr.bf16.gmra.mrb[0].mxu0 %v958
    %v1028 = vpop.f32.mrb[0].mxu0
    %v1029 = vadd.f32 0.0, %v1028
    %v1030 = vpop.f32.mrb[0].mxu0
    %v1031 = vpop.f32.mrb[0].mxu0
    %v1032 = vadd.f32 0.0, %v1031
    %v1033 = vpop.f32.mrb[0].mxu0
    %1034 = vmatprep.mubr.bf16.mxu0 0
    %1035 = vmatmul.mubr.bf16.gmra.mrb[0].mxu0 %v959
    %v1036 = vpop.f32.mrb[0].mxu0
    %v1037 = vadd.f32 0.0, %v1036
    %v1038 = vpop.f32.mrb[0].mxu0
    %v1039 = vpop.f32.mrb[0].mxu0
    %v1040 = vadd.f32 0.0, %v1039
    %v1041 = vpop.f32.mrb[0].mxu0
    %1042 = vmatprep.mubr.bf16.mxu0 0
    %1043 = vmatmul.mubr.bf16.gmra.mrb[0].mxu0 %v960
    %v1044 = vpop.f32.mrb[0].mxu0
    %v1045 = vadd.f32 0.0, %v1044
    %v1046 = vpop.f32.mrb[0].mxu0
    %v1047 = vpop.f32.mrb[0].mxu0
    %v1048 = vadd.f32 0.0, %v1047
    %v1049 = vpop.f32.mrb[0].mxu0
    %1050 = vmatprep.mubr.bf16.mxu0 0
    %1051 = vmatmul.mubr.bf16.gmra.mrb[0].mxu0 %v961
    %v1052 = vpop.f32.mrb[0].mxu0
    %v1053 = vadd.f32 0.0, %v1052
    %v1054 = vpop.f32.mrb[0].mxu0
    %v1055 = vpop.f32.mrb[0].mxu0
    %v1056 = vadd.f32 0.0, %v1055
    %v1057 = vpop.f32.mrb[0].mxu0
    %1058 = vdwg.mxu0
    %v1059 = vmul.f32 %v128, %v997
    %v1060 = vmul.f32 %v129, %v1000
    %v1061 = vmul.f32 %v130, %v1005
    %v1062 = vmul.f32 %v131, %v1008
    %v1063 = vmul.f32 %v132, %v1013
    %v1064 = vmul.f32 %v133, %v1016
    %v1065 = vmul.f32 %v134, %v1021
    %v1066 = vmul.f32 %v135, %v1024
    %v1067 = vmul.f32 %v136, %v1029
    %v1068 = vmul.f32 %v137, %v1032
    %v1069 = vmul.f32 %v138, %v1037
    %v1070 = vmul.f32 %v139, %v1040
    %v1071 = vmul.f32 %v140, %v1045
    %v1072 = vmul.f32 %v141, %v1048
    %v1073 = vmul.f32 %v142, %v1053
    %v1074 = vmul.f32 %v143, %v1056
    %v1075 = vadd.f32 %v1059, %v1060
    %v1076 = vadd.f32 %v1075, %v1061
    %v1077 = vadd.f32 %v1076, %v1062
    %v1078 = vadd.f32 %v1077, %v1063
    %v1079 = vadd.f32 %v1078, %v1064
    %v1080 = vadd.f32 %v1079, %v1065
    %v1081 = vadd.f32 %v1080, %v1066
    %v1082 = vadd.f32 %v1081, %v1067
    %v1083 = vadd.f32 %v1082, %v1068
    %v1084 = vadd.f32 %v1083, %v1069
    %v1085 = vadd.f32 %v1084, %v1070
    %v1086 = vadd.f32 %v1085, %v1071
    %v1087 = vadd.f32 %v1086, %v1072
    %v1088 = vadd.f32 %v1087, %v1073
    %v1089 = vadd.f32 %v1088, %v1074
    %v1090 = vrot.slane %v1089, 4
    %v1091 = vadd.f32 %v1089, %v1090
    %v1092 = vrot.slane %v1091, 2
    %v1093 = vadd.f32 %v1091, %v1092
    %v1094 = vrot.slane %v1093, 1
    %v1095 = vadd.f32 %v1093, %v1094
    %1096 = vset.pattern.permute.xlu0 2
    %1097 = vperm.xlu0 %1096, %v532
    %v1098 = vpop.permute.xlu0 %1097
    %1100 = vset.pattern.permute.xlu0 2
    %1101 = vperm.xlu0 %1100, %v533
    %v1102 = vpop.permute.xlu0 %1101
    %1104 = vset.pattern.permute.xlu0 2
    %1105 = vperm.xlu0 %1104, %v534
    %v1106 = vpop.permute.xlu0 %1105
    %1108 = vset.pattern.permute.xlu0 2
    %1109 = vperm.xlu0 %1108, %v535
    %v1110 = vpop.permute.xlu0 %1109
    %1112 = vset.pattern.permute.xlu0 2
    %1113 = vperm.xlu0 %1112, %v536
    %v1114 = vpop.permute.xlu0 %1113
    %1116 = vset.pattern.permute.xlu0 2
    %1117 = vperm.xlu0 %1116, %v537
    %v1118 = vpop.permute.xlu0 %1117
    %1120 = vset.pattern.permute.xlu0 2
    %1121 = vperm.xlu0 %1120, %v538
    %v1122 = vpop.permute.xlu0 %1121
    %1124 = vset.pattern.permute.xlu0 2
    %1125 = vperm.xlu0 %1124, %v539
    %v1126 = vpop.permute.xlu0 %1125
    %1128 = vset.pattern.permute.xlu0 2
    %1129 = vperm.xlu0 %1128, %v540
    %v1130 = vpop.permute.xlu0 %1129
    %1132 = vset.pattern.permute.xlu0 2
    %1133 = vperm.xlu0 %1132, %v541
    %v1134 = vpop.permute.xlu0 %1133
    %1136 = vset.pattern.permute.xlu0 2
    %1137 = vperm.xlu0 %1136, %v542
    %v1138 = vpop.permute.xlu0 %1137
    %1140 = vset.pattern.permute.xlu0 2
    %1141 = vperm.xlu0 %1140, %v543
    %v1142 = vpop.permute.xlu0 %1141
    %1144 = vset.pattern.permute.xlu0 2
    %1145 = vperm.xlu0 %1144, %v544
    %v1146 = vpop.permute.xlu0 %1145
    %1148 = vset.pattern.permute.xlu0 2
    %1149 = vperm.xlu0 %1148, %v545
    %v1150 = vpop.permute.xlu0 %1149
    %1152 = vset.pattern.permute.xlu0 2
    %1153 = vperm.xlu0 %1152, %v546
    %v1154 = vpop.permute.xlu0 %1153
    %1156 = vset.pattern.permute.xlu0 2
    %1157 = vperm.xlu0 %1156, %v547
    %v1158 = vpop.permute.xlu0 %1157
    %v1160 = vmul.f32 %v1098, %v499
    %v1161 = vmul.f32 %v1102, %v500
    %v1162 = vmul.f32 %v1106, %v501
    %v1163 = vmul.f32 %v1110, %v502
    %v1164 = vmul.f32 %v1114, %v503
    %v1165 = vmul.f32 %v1118, %v504
    %v1166 = vmul.f32 %v1122, %v505
    %v1167 = vmul.f32 %v1126, %v506
    %v1168 = vmul.f32 %v1130, %v507
    %v1169 = vmul.f32 %v1134, %v508
    %v1170 = vmul.f32 %v1138, %v509
    %v1171 = vmul.f32 %v1142, %v510
    %v1172 = vmul.f32 %v1146, %v511
    %v1173 = vmul.f32 %v1150, %v512
    %v1174 = vmul.f32 %v1154, %v513
    %v1175 = vmul.f32 %v1158, %v514
    %v1176 = vlaneseq
    %v1177 = vshrl.u32 %v1176, 7
    %v1178 = vsub.s32 2, %v1177
    %v1179 = vrot.slane %v531, %v1178
    %v1180 = vmul.f32 %v1160, %v1179
    %v1181 = vmul.f32 %v1161, %v1179
    %v1182 = vmul.f32 %v1162, %v1179
    %v1183 = vmul.f32 %v1163, %v1179
    %v1184 = vmul.f32 %v1164, %v1179
    %v1185 = vmul.f32 %v1165, %v1179
    %v1186 = vmul.f32 %v1166, %v1179
    %v1187 = vmul.f32 %v1167, %v1179
    %v1188 = vmul.f32 %v1168, %v1179
    %v1189 = vmul.f32 %v1169, %v1179
    %v1190 = vmul.f32 %v1170, %v1179
    %v1191 = vmul.f32 %v1171, %v1179
    %v1192 = vmul.f32 %v1172, %v1179
    %v1193 = vmul.f32 %v1173, %v1179
    %v1194 = vmul.f32 %v1174, %v1179
    %v1195 = vmul.f32 %v1175, %v1179
    %v1196 = vpack.c.bf16 %v1181, %v1180
    %v1197 = vpack.c.bf16 %v1183, %v1182
    %v1198 = vpack.c.bf16 %v1185, %v1184
    %v1199 = vpack.c.bf16 %v1187, %v1186
    %v1200 = vpack.c.bf16 %v1189, %v1188
    %v1201 = vpack.c.bf16 %v1191, %v1190
    %v1202 = vpack.c.bf16 %v1193, %v1192
    %v1203 = vpack.c.bf16 %v1195, %v1194
    %1204 = vmatprep.subr.bf16.mxu0 0
    %1205 = vmatpush1.bf16.msra.mxu0 %v704
    %1206 = vmatprep.subr.bf16.mxu0 0
    %1207 = vmatpush1.bf16.msra.mxu0 %v705
    %1208 = vmatprep.subr.bf16.mxu0 0
    %1209 = vmatpush1.bf16.msra.mxu0 %v706
    %1210 = vmatprep.subr.bf16.mxu0 0
    %1211 = vmatpush1.bf16.msra.mxu0 %v707
    %1212 = vmatprep.subr.bf16.mxu0 0
    %1213 = vmatpush1.bf16.msra.mxu0 %v708
    %1214 = vmatprep.subr.bf16.mxu0 0
    %1215 = vmatpush1.bf16.msra.mxu0 %v709
    %1216 = vmatprep.subr.bf16.mxu0 0
    %1217 = vmatpush1.bf16.msra.mxu0 %v710
    %1218 = vmatprep.subr.bf16.mxu0 0
    %1219 = vmatpush1.bf16.msra.mxu0 %v711
    %1220 = vmatprep.subr.bf16.mxu0 0
    %1221 = vmatpush1.bf16.msra.mxu0 0
    %1222 = vmatprep.subr.bf16.mxu0 0
    %1223 = vmatpush1.bf16.msra.mxu0 0
    %1224 = vmatprep.subr.bf16.mxu0 0
    %1225 = vmatpush1.bf16.msra.mxu0 0
    %1226 = vmatprep.subr.bf16.mxu0 0
    %1227 = vmatpush1.bf16.msra.mxu0 0
    %1228 = vmatprep.subr.bf16.mxu0 0
    %1229 = vmatpush1.bf16.msra.mxu0 0
    %1230 = vmatprep.subr.bf16.mxu0 0
    %1231 = vmatpush1.bf16.msra.mxu0 0
    %1232 = vmatprep.subr.bf16.mxu0 0
    %1233 = vmatpush1.bf16.msra.mxu0 0
    %1234 = vmatprep.subr.bf16.mxu0 0
    %1235 = vmatpush1.bf16.msra.mxu0 0
    %1236 = vmatprep.mubr.bf16.mxu0 0
    %1237 = vmatmul.mubr.bf16.gmra.mrb[0].mxu0 %v1196
    %v1238 = vpop.f32.mrb[0].mxu0
    %v1239 = vadd.f32 0.0, %v1238
    %v1240 = vpop.f32.mrb[0].mxu0
    %v1241 = vpop.f32.mrb[0].mxu0
    %v1242 = vadd.f32 0.0, %v1241
    %v1243 = vpop.f32.mrb[0].mxu0
    %1244 = vmatprep.mubr.bf16.mxu0 0
    %1245 = vmatmul.mubr.bf16.gmra.mrb[0].mxu0 %v1197
    %v1246 = vpop.f32.mrb[0].mxu0
    %v1247 = vadd.f32 0.0, %v1246
    %v1248 = vpop.f32.mrb[0].mxu0
    %v1249 = vpop.f32.mrb[0].mxu0
    %v1250 = vadd.f32 0.0, %v1249
    %v1251 = vpop.f32.mrb[0].mxu0
    %1252 = vmatprep.mubr.bf16.mxu0 0
    %1253 = vmatmul.mubr.bf16.gmra.mrb[0].mxu0 %v1198
    %v1254 = vpop.f32.mrb[0].mxu0
    %v1255 = vadd.f32 0.0, %v1254
    %v1256 = vpop.f32.mrb[0].mxu0
    %v1257 = vpop.f32.mrb[0].mxu0
    %v1258 = vadd.f32 0.0, %v1257
    %v1259 = vpop.f32.mrb[0].mxu0
    %1260 = vmatprep.mubr.bf16.mxu0 0
    %1261 = vmatmul.mubr.bf16.gmra.mrb[0].mxu0 %v1199
    %v1262 = vpop.f32.mrb[0].mxu0
    %v1263 = vadd.f32 0.0, %v1262
    %v1264 = vpop.f32.mrb[0].mxu0
    %v1265 = vpop.f32.mrb[0].mxu0
    %v1266 = vadd.f32 0.0, %v1265
    %v1267 = vpop.f32.mrb[0].mxu0
    %1268 = vmatprep.mubr.bf16.mxu0 0
    %1269 = vmatmul.mubr.bf16.gmra.mrb[0].mxu0 %v1200
    %v1270 = vpop.f32.mrb[0].mxu0
    %v1271 = vadd.f32 0.0, %v1270
    %v1272 = vpop.f32.mrb[0].mxu0
    %v1273 = vpop.f32.mrb[0].mxu0
    %v1274 = vadd.f32 0.0, %v1273
    %v1275 = vpop.f32.mrb[0].mxu0
    %1276 = vmatprep.mubr.bf16.mxu0 0
    %1277 = vmatmul.mubr.bf16.gmra.mrb[0].mxu0 %v1201
    %v1278 = vpop.f32.mrb[0].mxu0
    %v1279 = vadd.f32 0.0, %v1278
    %v1280 = vpop.f32.mrb[0].mxu0
    %v1281 = vpop.f32.mrb[0].mxu0
    %v1282 = vadd.f32 0.0, %v1281
    %v1283 = vpop.f32.mrb[0].mxu0
    %1284 = vmatprep.mubr.bf16.mxu0 0
    %1285 = vmatmul.mubr.bf16.gmra.mrb[0].mxu0 %v1202
    %v1286 = vpop.f32.mrb[0].mxu0
    %v1287 = vadd.f32 0.0, %v1286
    %v1288 = vpop.f32.mrb[0].mxu0
    %v1289 = vpop.f32.mrb[0].mxu0
    %v1290 = vadd.f32 0.0, %v1289
    %v1291 = vpop.f32.mrb[0].mxu0
    %1292 = vmatprep.mubr.bf16.mxu0 0
    %1293 = vmatmul.mubr.bf16.gmra.mrb[0].mxu0 %v1203
    %v1294 = vpop.f32.mrb[0].mxu0
    %v1295 = vadd.f32 0.0, %v1294
    %v1296 = vpop.f32.mrb[0].mxu0
    %v1297 = vpop.f32.mrb[0].mxu0
    %v1298 = vadd.f32 0.0, %v1297
    %v1299 = vpop.f32.mrb[0].mxu0
    %1300 = vdwg.mxu0
    %v1301 = vmul.f32 %v128, %v1239
    %v1302 = vmul.f32 %v129, %v1242
    %v1303 = vmul.f32 %v130, %v1247
    %v1304 = vmul.f32 %v131, %v1250
    %v1305 = vmul.f32 %v132, %v1255
    %v1306 = vmul.f32 %v133, %v1258
    %v1307 = vmul.f32 %v134, %v1263
    %v1308 = vmul.f32 %v135, %v1266
    %v1309 = vmul.f32 %v136, %v1271
    %v1310 = vmul.f32 %v137, %v1274
    %v1311 = vmul.f32 %v138, %v1279
    %v1312 = vmul.f32 %v139, %v1282
    %v1313 = vmul.f32 %v140, %v1287
    %v1314 = vmul.f32 %v141, %v1290
    %v1315 = vmul.f32 %v142, %v1295
    %v1316 = vmul.f32 %v143, %v1298
    %v1317 = vadd.f32 %v1301, %v1302
    %v1318 = vadd.f32 %v1317, %v1303
    %v1319 = vadd.f32 %v1318, %v1304
    %v1320 = vadd.f32 %v1319, %v1305
    %v1321 = vadd.f32 %v1320, %v1306
    %v1322 = vadd.f32 %v1321, %v1307
    %v1323 = vadd.f32 %v1322, %v1308
    %v1324 = vadd.f32 %v1323, %v1309
    %v1325 = vadd.f32 %v1324, %v1310
    %v1326 = vadd.f32 %v1325, %v1311
    %v1327 = vadd.f32 %v1326, %v1312
    %v1328 = vadd.f32 %v1327, %v1313
    %v1329 = vadd.f32 %v1328, %v1314
    %v1330 = vadd.f32 %v1329, %v1315
    %v1331 = vadd.f32 %v1330, %v1316
    %v1332 = vrot.slane %v1331, 4
    %v1333 = vadd.f32 %v1331, %v1332
    %v1334 = vrot.slane %v1333, 2
    %v1335 = vadd.f32 %v1333, %v1334
    %v1336 = vrot.slane %v1335, 1
    %v1337 = vadd.f32 %v1335, %v1336
    %1338 = vset.pattern.permute.xlu0 3
    %1339 = vperm.xlu0 %1338, %v532
    %v1340 = vpop.permute.xlu0 %1339
    %1342 = vset.pattern.permute.xlu0 3
    %1343 = vperm.xlu0 %1342, %v533
    %v1344 = vpop.permute.xlu0 %1343
    %1346 = vset.pattern.permute.xlu0 3
    %1347 = vperm.xlu0 %1346, %v534
    %v1348 = vpop.permute.xlu0 %1347
    %1350 = vset.pattern.permute.xlu0 3
    %1351 = vperm.xlu0 %1350, %v535
    %v1352 = vpop.permute.xlu0 %1351
    %1354 = vset.pattern.permute.xlu0 3
    %1355 = vperm.xlu0 %1354, %v536
    %v1356 = vpop.permute.xlu0 %1355
    %1358 = vset.pattern.permute.xlu0 3
    %1359 = vperm.xlu0 %1358, %v537
    %v1360 = vpop.permute.xlu0 %1359
    %1362 = vset.pattern.permute.xlu0 3
    %1363 = vperm.xlu0 %1362, %v538
    %v1364 = vpop.permute.xlu0 %1363
    %1366 = vset.pattern.permute.xlu0 3
    %1367 = vperm.xlu0 %1366, %v539
    %v1368 = vpop.permute.xlu0 %1367
    %1370 = vset.pattern.permute.xlu0 3
    %1371 = vperm.xlu0 %1370, %v540
    %v1372 = vpop.permute.xlu0 %1371
    %1374 = vset.pattern.permute.xlu0 3
    %1375 = vperm.xlu0 %1374, %v541
    %v1376 = vpop.permute.xlu0 %1375
    %1378 = vset.pattern.permute.xlu0 3
    %1379 = vperm.xlu0 %1378, %v542
    %v1380 = vpop.permute.xlu0 %1379
    %1382 = vset.pattern.permute.xlu0 3
    %1383 = vperm.xlu0 %1382, %v543
    %v1384 = vpop.permute.xlu0 %1383
    %1386 = vset.pattern.permute.xlu0 3
    %1387 = vperm.xlu0 %1386, %v544
    %v1388 = vpop.permute.xlu0 %1387
    %1390 = vset.pattern.permute.xlu0 3
    %1391 = vperm.xlu0 %1390, %v545
    %v1392 = vpop.permute.xlu0 %1391
    %1394 = vset.pattern.permute.xlu0 3
    %1395 = vperm.xlu0 %1394, %v546
    %v1396 = vpop.permute.xlu0 %1395
    %1398 = vset.pattern.permute.xlu0 3
    %1399 = vperm.xlu0 %1398, %v547
    %v1400 = vpop.permute.xlu0 %1399
    %v1402 = vmul.f32 %v1340, %v499
    %v1403 = vmul.f32 %v1344, %v500
    %v1404 = vmul.f32 %v1348, %v501
    %v1405 = vmul.f32 %v1352, %v502
    %v1406 = vmul.f32 %v1356, %v503
    %v1407 = vmul.f32 %v1360, %v504
    %v1408 = vmul.f32 %v1364, %v505
    %v1409 = vmul.f32 %v1368, %v506
    %v1410 = vmul.f32 %v1372, %v507
    %v1411 = vmul.f32 %v1376, %v508
    %v1412 = vmul.f32 %v1380, %v509
    %v1413 = vmul.f32 %v1384, %v510
    %v1414 = vmul.f32 %v1388, %v511
    %v1415 = vmul.f32 %v1392, %v512
    %v1416 = vmul.f32 %v1396, %v513
    %v1417 = vmul.f32 %v1400, %v514
    %v1418 = vlaneseq
    %v1419 = vshrl.u32 %v1418, 7
    %v1420 = vsub.s32 3, %v1419
    %v1421 = vrot.slane %v531, %v1420
    %v1422 = vmul.f32 %v1402, %v1421
    %v1423 = vmul.f32 %v1403, %v1421
    %v1424 = vmul.f32 %v1404, %v1421
    %v1425 = vmul.f32 %v1405, %v1421
    %v1426 = vmul.f32 %v1406, %v1421
    %v1427 = vmul.f32 %v1407, %v1421
    %v1428 = vmul.f32 %v1408, %v1421
    %v1429 = vmul.f32 %v1409, %v1421
    %v1430 = vmul.f32 %v1410, %v1421
    %v1431 = vmul.f32 %v1411, %v1421
    %v1432 = vmul.f32 %v1412, %v1421
    %v1433 = vmul.f32 %v1413, %v1421
    %v1434 = vmul.f32 %v1414, %v1421
    %v1435 = vmul.f32 %v1415, %v1421
    %v1436 = vmul.f32 %v1416, %v1421
    %v1437 = vmul.f32 %v1417, %v1421
    %v1438 = vpack.c.bf16 %v1423, %v1422
    %v1439 = vpack.c.bf16 %v1425, %v1424
    %v1440 = vpack.c.bf16 %v1427, %v1426
    %v1441 = vpack.c.bf16 %v1429, %v1428
    %v1442 = vpack.c.bf16 %v1431, %v1430
    %v1443 = vpack.c.bf16 %v1433, %v1432
    %v1444 = vpack.c.bf16 %v1435, %v1434
    %v1445 = vpack.c.bf16 %v1437, %v1436
    %1446 = vmatprep.subr.bf16.mxu0 0
    %1447 = vmatpush1.bf16.msra.mxu0 %v704
    %1448 = vmatprep.subr.bf16.mxu0 0
    %1449 = vmatpush1.bf16.msra.mxu0 %v705
    %1450 = vmatprep.subr.bf16.mxu0 0
    %1451 = vmatpush1.bf16.msra.mxu0 %v706
    %1452 = vmatprep.subr.bf16.mxu0 0
    %1453 = vmatpush1.bf16.msra.mxu0 %v707
    %1454 = vmatprep.subr.bf16.mxu0 0
    %1455 = vmatpush1.bf16.msra.mxu0 %v708
    %1456 = vmatprep.subr.bf16.mxu0 0
    %1457 = vmatpush1.bf16.msra.mxu0 %v709
    %1458 = vmatprep.subr.bf16.mxu0 0
    %1459 = vmatpush1.bf16.msra.mxu0 %v710
    %1460 = vmatprep.subr.bf16.mxu0 0
    %1461 = vmatpush1.bf16.msra.mxu0 %v711
    %1462 = vmatprep.subr.bf16.mxu0 0
    %1463 = vmatpush1.bf16.msra.mxu0 0
    %1464 = vmatprep.subr.bf16.mxu0 0
    %1465 = vmatpush1.bf16.msra.mxu0 0
    %1466 = vmatprep.subr.bf16.mxu0 0
    %1467 = vmatpush1.bf16.msra.mxu0 0
    %1468 = vmatprep.subr.bf16.mxu0 0
    %1469 = vmatpush1.bf16.msra.mxu0 0
    %1470 = vmatprep.subr.bf16.mxu0 0
    %1471 = vmatpush1.bf16.msra.mxu0 0
    %1472 = vmatprep.subr.bf16.mxu0 0
    %1473 = vmatpush1.bf16.msra.mxu0 0
    %1474 = vmatprep.subr.bf16.mxu0 0
    %1475 = vmatpush1.bf16.msra.mxu0 0
    %1476 = vmatprep.subr.bf16.mxu0 0
    %1477 = vmatpush1.bf16.msra.mxu0 0
    %1478 = vmatprep.mubr.bf16.mxu0 0
    %1479 = vmatmul.mubr.bf16.gmra.mrb[0].mxu0 %v1438
    %v1480 = vpop.f32.mrb[0].mxu0
    %v1481 = vadd.f32 0.0, %v1480
    %v1482 = vpop.f32.mrb[0].mxu0
    %v1483 = vpop.f32.mrb[0].mxu0
    %v1484 = vadd.f32 0.0, %v1483
    %v1485 = vpop.f32.mrb[0].mxu0
    %1486 = vmatprep.mubr.bf16.mxu0 0
    %1487 = vmatmul.mubr.bf16.gmra.mrb[0].mxu0 %v1439
    %v1488 = vpop.f32.mrb[0].mxu0
    %v1489 = vadd.f32 0.0, %v1488
    %v1490 = vpop.f32.mrb[0].mxu0
    %v1491 = vpop.f32.mrb[0].mxu0
    %v1492 = vadd.f32 0.0, %v1491
    %v1493 = vpop.f32.mrb[0].mxu0
    %1494 = vmatprep.mubr.bf16.mxu0 0
    %1495 = vmatmul.mubr.bf16.gmra.mrb[0].mxu0 %v1440
    %v1496 = vpop.f32.mrb[0].mxu0
    %v1497 = vadd.f32 0.0, %v1496
    %v1498 = vpop.f32.mrb[0].mxu0
    %v1499 = vpop.f32.mrb[0].mxu0
    %v1500 = vadd.f32 0.0, %v1499
    %v1501 = vpop.f32.mrb[0].mxu0
    %1502 = vmatprep.mubr.bf16.mxu0 0
    %1503 = vmatmul.mubr.bf16.gmra.mrb[0].mxu0 %v1441
    %v1504 = vpop.f32.mrb[0].mxu0
    %v1505 = vadd.f32 0.0, %v1504
    %v1506 = vpop.f32.mrb[0].mxu0
    %v1507 = vpop.f32.mrb[0].mxu0
    %v1508 = vadd.f32 0.0, %v1507
    %v1509 = vpop.f32.mrb[0].mxu0
    %1510 = vmatprep.mubr.bf16.mxu0 0
    %1511 = vmatmul.mubr.bf16.gmra.mrb[0].mxu0 %v1442
    %v1512 = vpop.f32.mrb[0].mxu0
    %v1513 = vadd.f32 0.0, %v1512
    %v1514 = vpop.f32.mrb[0].mxu0
    %v1515 = vpop.f32.mrb[0].mxu0
    %v1516 = vadd.f32 0.0, %v1515
    %v1517 = vpop.f32.mrb[0].mxu0
    %1518 = vmatprep.mubr.bf16.mxu0 0
    %1519 = vmatmul.mubr.bf16.gmra.mrb[0].mxu0 %v1443
    %v1520 = vpop.f32.mrb[0].mxu0
    %v1521 = vadd.f32 0.0, %v1520
    %v1522 = vpop.f32.mrb[0].mxu0
    %v1523 = vpop.f32.mrb[0].mxu0
    %v1524 = vadd.f32 0.0, %v1523
    %v1525 = vpop.f32.mrb[0].mxu0
    %1526 = vmatprep.mubr.bf16.mxu0 0
    %1527 = vmatmul.mubr.bf16.gmra.mrb[0].mxu0 %v1444
    %v1528 = vpop.f32.mrb[0].mxu0
    %v1529 = vadd.f32 0.0, %v1528
    %v1530 = vpop.f32.mrb[0].mxu0
    %v1531 = vpop.f32.mrb[0].mxu0
    %v1532 = vadd.f32 0.0, %v1531
    %v1533 = vpop.f32.mrb[0].mxu0
    %1534 = vmatprep.mubr.bf16.mxu0 0
    %1535 = vmatmul.mubr.bf16.gmra.mrb[0].mxu0 %v1445
    %v1536 = vpop.f32.mrb[0].mxu0
    %v1537 = vadd.f32 0.0, %v1536
    %v1538 = vpop.f32.mrb[0].mxu0
    %v1539 = vpop.f32.mrb[0].mxu0
    %v1540 = vadd.f32 0.0, %v1539
    %v1541 = vpop.f32.mrb[0].mxu0
    %1542 = vdwg.mxu0
    %v1543 = vmul.f32 %v128, %v1481
    %v1544 = vmul.f32 %v129, %v1484
    %v1545 = vmul.f32 %v130, %v1489
    %v1546 = vmul.f32 %v131, %v1492
    %v1547 = vmul.f32 %v132, %v1497
    %v1548 = vmul.f32 %v133, %v1500
    %v1549 = vmul.f32 %v134, %v1505
    %v1550 = vmul.f32 %v135, %v1508
    %v1551 = vmul.f32 %v136, %v1513
    %v1552 = vmul.f32 %v137, %v1516
    %v1553 = vmul.f32 %v138, %v1521
    %v1554 = vmul.f32 %v139, %v1524
    %v1555 = vmul.f32 %v140, %v1529
    %v1556 = vmul.f32 %v141, %v1532
    %v1557 = vmul.f32 %v142, %v1537
    %v1558 = vmul.f32 %v143, %v1540
    %v1559 = vadd.f32 %v1543, %v1544
    %v1560 = vadd.f32 %v1559, %v1545
    %v1561 = vadd.f32 %v1560, %v1546
    %v1562 = vadd.f32 %v1561, %v1547
    %v1563 = vadd.f32 %v1562, %v1548
    %v1564 = vadd.f32 %v1563, %v1549
    %v1565 = vadd.f32 %v1564, %v1550
    %v1566 = vadd.f32 %v1565, %v1551
    %v1567 = vadd.f32 %v1566, %v1552
    %v1568 = vadd.f32 %v1567, %v1553
    %v1569 = vadd.f32 %v1568, %v1554
    %v1570 = vadd.f32 %v1569, %v1555
    %v1571 = vadd.f32 %v1570, %v1556
    %v1572 = vadd.f32 %v1571, %v1557
    %v1573 = vadd.f32 %v1572, %v1558
    %v1574 = vrot.slane %v1573, 4
    %v1575 = vadd.f32 %v1573, %v1574
    %v1576 = vrot.slane %v1575, 2
    %v1577 = vadd.f32 %v1575, %v1576
    %v1578 = vrot.slane %v1577, 1
    %v1579 = vadd.f32 %v1577, %v1578
    %1580 = vset.pattern.permute.xlu0 4
    %1581 = vperm.xlu0 %1580, %v532
    %v1582 = vpop.permute.xlu0 %1581
    %1584 = vset.pattern.permute.xlu0 4
    %1585 = vperm.xlu0 %1584, %v533
    %v1586 = vpop.permute.xlu0 %1585
    %1588 = vset.pattern.permute.xlu0 4
    %1589 = vperm.xlu0 %1588, %v534
    %v1590 = vpop.permute.xlu0 %1589
    %1592 = vset.pattern.permute.xlu0 4
    %1593 = vperm.xlu0 %1592, %v535
    %v1594 = vpop.permute.xlu0 %1593
    %1596 = vset.pattern.permute.xlu0 4
    %1597 = vperm.xlu0 %1596, %v536
    %v1598 = vpop.permute.xlu0 %1597
    %1600 = vset.pattern.permute.xlu0 4
    %1601 = vperm.xlu0 %1600, %v537
    %v1602 = vpop.permute.xlu0 %1601
    %1604 = vset.pattern.permute.xlu0 4
    %1605 = vperm.xlu0 %1604, %v538
    %v1606 = vpop.permute.xlu0 %1605
    %1608 = vset.pattern.permute.xlu0 4
    %1609 = vperm.xlu0 %1608, %v539
    %v1610 = vpop.permute.xlu0 %1609
    %1612 = vset.pattern.permute.xlu0 4
    %1613 = vperm.xlu0 %1612, %v540
    %v1614 = vpop.permute.xlu0 %1613
    %1616 = vset.pattern.permute.xlu0 4
    %1617 = vperm.xlu0 %1616, %v541
    %v1618 = vpop.permute.xlu0 %1617
    %1620 = vset.pattern.permute.xlu0 4
    %1621 = vperm.xlu0 %1620, %v542
    %v1622 = vpop.permute.xlu0 %1621
    %1624 = vset.pattern.permute.xlu0 4
    %1625 = vperm.xlu0 %1624, %v543
    %v1626 = vpop.permute.xlu0 %1625
    %1628 = vset.pattern.permute.xlu0 4
    %1629 = vperm.xlu0 %1628, %v544
    %v1630 = vpop.permute.xlu0 %1629
    %1632 = vset.pattern.permute.xlu0 4
    %1633 = vperm.xlu0 %1632, %v545
    %v1634 = vpop.permute.xlu0 %1633
    %1636 = vset.pattern.permute.xlu0 4
    %1637 = vperm.xlu0 %1636, %v546
    %v1638 = vpop.permute.xlu0 %1637
    %1640 = vset.pattern.permute.xlu0 4
    %1641 = vperm.xlu0 %1640, %v547
    %v1642 = vpop.permute.xlu0 %1641
    %v1644 = vmul.f32 %v1582, %v499
    %v1645 = vmul.f32 %v1586, %v500
    %v1646 = vmul.f32 %v1590, %v501
    %v1647 = vmul.f32 %v1594, %v502
    %v1648 = vmul.f32 %v1598, %v503
    %v1649 = vmul.f32 %v1602, %v504
    %v1650 = vmul.f32 %v1606, %v505
    %v1651 = vmul.f32 %v1610, %v506
    %v1652 = vmul.f32 %v1614, %v507
    %v1653 = vmul.f32 %v1618, %v508
    %v1654 = vmul.f32 %v1622, %v509
    %v1655 = vmul.f32 %v1626, %v510
    %v1656 = vmul.f32 %v1630, %v511
    %v1657 = vmul.f32 %v1634, %v512
    %v1658 = vmul.f32 %v1638, %v513
    %v1659 = vmul.f32 %v1642, %v514
    %v1660 = vlaneseq
    %v1661 = vshrl.u32 %v1660, 7
    %v1662 = vsub.s32 4, %v1661
    %v1663 = vrot.slane %v531, %v1662
    %v1664 = vmul.f32 %v1644, %v1663
    %v1665 = vmul.f32 %v1645, %v1663
    %v1666 = vmul.f32 %v1646, %v1663
    %v1667 = vmul.f32 %v1647, %v1663
    %v1668 = vmul.f32 %v1648, %v1663
    %v1669 = vmul.f32 %v1649, %v1663
    %v1670 = vmul.f32 %v1650, %v1663
    %v1671 = vmul.f32 %v1651, %v1663
    %v1672 = vmul.f32 %v1652, %v1663
    %v1673 = vmul.f32 %v1653, %v1663
    %v1674 = vmul.f32 %v1654, %v1663
    %v1675 = vmul.f32 %v1655, %v1663
    %v1676 = vmul.f32 %v1656, %v1663
    %v1677 = vmul.f32 %v1657, %v1663
    %v1678 = vmul.f32 %v1658, %v1663
    %v1679 = vmul.f32 %v1659, %v1663
    %v1680 = vpack.c.bf16 %v1665, %v1664
    %v1681 = vpack.c.bf16 %v1667, %v1666
    %v1682 = vpack.c.bf16 %v1669, %v1668
    %v1683 = vpack.c.bf16 %v1671, %v1670
    %v1684 = vpack.c.bf16 %v1673, %v1672
    %v1685 = vpack.c.bf16 %v1675, %v1674
    %v1686 = vpack.c.bf16 %v1677, %v1676
    %v1687 = vpack.c.bf16 %v1679, %v1678
    %1688 = vmatprep.subr.bf16.mxu0 0
    %1689 = vmatpush1.bf16.msra.mxu0 %v704
    %1690 = vmatprep.subr.bf16.mxu0 0
    %1691 = vmatpush1.bf16.msra.mxu0 %v705
    %1692 = vmatprep.subr.bf16.mxu0 0
    %1693 = vmatpush1.bf16.msra.mxu0 %v706
    %1694 = vmatprep.subr.bf16.mxu0 0
    %1695 = vmatpush1.bf16.msra.mxu0 %v707
    %1696 = vmatprep.subr.bf16.mxu0 0
    %1697 = vmatpush1.bf16.msra.mxu0 %v708
    %1698 = vmatprep.subr.bf16.mxu0 0
    %1699 = vmatpush1.bf16.msra.mxu0 %v709
    %1700 = vmatprep.subr.bf16.mxu0 0
    %1701 = vmatpush1.bf16.msra.mxu0 %v710
    %1702 = vmatprep.subr.bf16.mxu0 0
    %1703 = vmatpush1.bf16.msra.mxu0 %v711
    %1704 = vmatprep.subr.bf16.mxu0 0
    %1705 = vmatpush1.bf16.msra.mxu0 0
    %1706 = vmatprep.subr.bf16.mxu0 0
    %1707 = vmatpush1.bf16.msra.mxu0 0
    %1708 = vmatprep.subr.bf16.mxu0 0
    %1709 = vmatpush1.bf16.msra.mxu0 0
    %1710 = vmatprep.subr.bf16.mxu0 0
    %1711 = vmatpush1.bf16.msra.mxu0 0
    %1712 = vmatprep.subr.bf16.mxu0 0
    %1713 = vmatpush1.bf16.msra.mxu0 0
    %1714 = vmatprep.subr.bf16.mxu0 0
    %1715 = vmatpush1.bf16.msra.mxu0 0
    %1716 = vmatprep.subr.bf16.mxu0 0
    %1717 = vmatpush1.bf16.msra.mxu0 0
    %1718 = vmatprep.subr.bf16.mxu0 0
    %1719 = vmatpush1.bf16.msra.mxu0 0
    %1720 = vmatprep.mubr.bf16.mxu0 0
    %1721 = vmatmul.mubr.bf16.gmra.mrb[0].mxu0 %v1680
    %v1722 = vpop.f32.mrb[0].mxu0
    %v1723 = vadd.f32 0.0, %v1722
    %v1724 = vpop.f32.mrb[0].mxu0
    %v1725 = vpop.f32.mrb[0].mxu0
    %v1726 = vadd.f32 0.0, %v1725
    %v1727 = vpop.f32.mrb[0].mxu0
    %1728 = vmatprep.mubr.bf16.mxu0 0
    %1729 = vmatmul.mubr.bf16.gmra.mrb[0].mxu0 %v1681
    %v1730 = vpop.f32.mrb[0].mxu0
    %v1731 = vadd.f32 0.0, %v1730
    %v1732 = vpop.f32.mrb[0].mxu0
    %v1733 = vpop.f32.mrb[0].mxu0
    %v1734 = vadd.f32 0.0, %v1733
    %v1735 = vpop.f32.mrb[0].mxu0
    %1736 = vmatprep.mubr.bf16.mxu0 0
    %1737 = vmatmul.mubr.bf16.gmra.mrb[0].mxu0 %v1682
    %v1738 = vpop.f32.mrb[0].mxu0
    %v1739 = vadd.f32 0.0, %v1738
    %v1740 = vpop.f32.mrb[0].mxu0
    %v1741 = vpop.f32.mrb[0].mxu0
    %v1742 = vadd.f32 0.0, %v1741
    %v1743 = vpop.f32.mrb[0].mxu0
    %1744 = vmatprep.mubr.bf16.mxu0 0
    %1745 = vmatmul.mubr.bf16.gmra.mrb[0].mxu0 %v1683
    %v1746 = vpop.f32.mrb[0].mxu0
    %v1747 = vadd.f32 0.0, %v1746
    %v1748 = vpop.f32.mrb[0].mxu0
    %v1749 = vpop.f32.mrb[0].mxu0
    %v1750 = vadd.f32 0.0, %v1749
    %v1751 = vpop.f32.mrb[0].mxu0
    %1752 = vmatprep.mubr.bf16.mxu0 0
    %1753 = vmatmul.mubr.bf16.gmra.mrb[0].mxu0 %v1684
    %v1754 = vpop.f32.mrb[0].mxu0
    %v1755 = vadd.f32 0.0, %v1754
    %v1756 = vpop.f32.mrb[0].mxu0
    %v1757 = vpop.f32.mrb[0].mxu0
    %v1758 = vadd.f32 0.0, %v1757
    %v1759 = vpop.f32.mrb[0].mxu0
    %1760 = vmatprep.mubr.bf16.mxu0 0
    %1761 = vmatmul.mubr.bf16.gmra.mrb[0].mxu0 %v1685
    %v1762 = vpop.f32.mrb[0].mxu0
    %v1763 = vadd.f32 0.0, %v1762
    %v1764 = vpop.f32.mrb[0].mxu0
    %v1765 = vpop.f32.mrb[0].mxu0
    %v1766 = vadd.f32 0.0, %v1765
    %v1767 = vpop.f32.mrb[0].mxu0
    %1768 = vmatprep.mubr.bf16.mxu0 0
    %1769 = vmatmul.mubr.bf16.gmra.mrb[0].mxu0 %v1686
    %v1770 = vpop.f32.mrb[0].mxu0
    %v1771 = vadd.f32 0.0, %v1770
    %v1772 = vpop.f32.mrb[0].mxu0
    %v1773 = vpop.f32.mrb[0].mxu0
    %v1774 = vadd.f32 0.0, %v1773
    %v1775 = vpop.f32.mrb[0].mxu0
    %1776 = vmatprep.mubr.bf16.mxu0 0
    %1777 = vmatmul.mubr.bf16.gmra.mrb[0].mxu0 %v1687
    %v1778 = vpop.f32.mrb[0].mxu0
    %v1779 = vadd.f32 0.0, %v1778
    %v1780 = vpop.f32.mrb[0].mxu0
    %v1781 = vpop.f32.mrb[0].mxu0
    %v1782 = vadd.f32 0.0, %v1781
    %v1783 = vpop.f32.mrb[0].mxu0
    %1784 = vdwg.mxu0
    %v1785 = vmul.f32 %v128, %v1723
    %v1786 = vmul.f32 %v129, %v1726
    %v1787 = vmul.f32 %v130, %v1731
    %v1788 = vmul.f32 %v131, %v1734
    %v1789 = vmul.f32 %v132, %v1739
    %v1790 = vmul.f32 %v133, %v1742
    %v1791 = vmul.f32 %v134, %v1747
    %v1792 = vmul.f32 %v135, %v1750
    %v1793 = vmul.f32 %v136, %v1755
    %v1794 = vmul.f32 %v137, %v1758
    %v1795 = vmul.f32 %v138, %v1763
    %v1796 = vmul.f32 %v139, %v1766
    %v1797 = vmul.f32 %v140, %v1771
    %v1798 = vmul.f32 %v141, %v1774
    %v1799 = vmul.f32 %v142, %v1779
    %v1800 = vmul.f32 %v143, %v1782
    %v1801 = vadd.f32 %v1785, %v1786
    %v1802 = vadd.f32 %v1801, %v1787
    %v1803 = vadd.f32 %v1802, %v1788
    %v1804 = vadd.f32 %v1803, %v1789
    %v1805 = vadd.f32 %v1804, %v1790
    %v1806 = vadd.f32 %v1805, %v1791
    %v1807 = vadd.f32 %v1806, %v1792
    %v1808 = vadd.f32 %v1807, %v1793
    %v1809 = vadd.f32 %v1808, %v1794
    %v1810 = vadd.f32 %v1809, %v1795
    %v1811 = vadd.f32 %v1810, %v1796
    %v1812 = vadd.f32 %v1811, %v1797
    %v1813 = vadd.f32 %v1812, %v1798
    %v1814 = vadd.f32 %v1813, %v1799
    %v1815 = vadd.f32 %v1814, %v1800
    %v1816 = vrot.slane %v1815, 4
    %v1817 = vadd.f32 %v1815, %v1816
    %v1818 = vrot.slane %v1817, 2
    %v1819 = vadd.f32 %v1817, %v1818
    %v1820 = vrot.slane %v1819, 1
    %v1821 = vadd.f32 %v1819, %v1820
    %1822 = vset.pattern.permute.xlu0 5
    %1823 = vperm.xlu0 %1822, %v532
    %v1824 = vpop.permute.xlu0 %1823
    %1826 = vset.pattern.permute.xlu0 5
    %1827 = vperm.xlu0 %1826, %v533
    %v1828 = vpop.permute.xlu0 %1827
    %1830 = vset.pattern.permute.xlu0 5
    %1831 = vperm.xlu0 %1830, %v534
    %v1832 = vpop.permute.xlu0 %1831
    %1834 = vset.pattern.permute.xlu0 5
    %1835 = vperm.xlu0 %1834, %v535
    %v1836 = vpop.permute.xlu0 %1835
    %1838 = vset.pattern.permute.xlu0 5
    %1839 = vperm.xlu0 %1838, %v536
    %v1840 = vpop.permute.xlu0 %1839
    %1842 = vset.pattern.permute.xlu0 5
    %1843 = vperm.xlu0 %1842, %v537
    %v1844 = vpop.permute.xlu0 %1843
    %1846 = vset.pattern.permute.xlu0 5
    %1847 = vperm.xlu0 %1846, %v538
    %v1848 = vpop.permute.xlu0 %1847
    %1850 = vset.pattern.permute.xlu0 5
    %1851 = vperm.xlu0 %1850, %v539
    %v1852 = vpop.permute.xlu0 %1851
    %1854 = vset.pattern.permute.xlu0 5
    %1855 = vperm.xlu0 %1854, %v540
    %v1856 = vpop.permute.xlu0 %1855
    %1858 = vset.pattern.permute.xlu0 5
    %1859 = vperm.xlu0 %1858, %v541
    %v1860 = vpop.permute.xlu0 %1859
    %1862 = vset.pattern.permute.xlu0 5
    %1863 = vperm.xlu0 %1862, %v542
    %v1864 = vpop.permute.xlu0 %1863
    %1866 = vset.pattern.permute.xlu0 5
    %1867 = vperm.xlu0 %1866, %v543
    %v1868 = vpop.permute.xlu0 %1867
    %1870 = vset.pattern.permute.xlu0 5
    %1871 = vperm.xlu0 %1870, %v544
    %v1872 = vpop.permute.xlu0 %1871
    %1874 = vset.pattern.permute.xlu0 5
    %1875 = vperm.xlu0 %1874, %v545
    %v1876 = vpop.permute.xlu0 %1875
    %1878 = vset.pattern.permute.xlu0 5
    %1879 = vperm.xlu0 %1878, %v546
    %v1880 = vpop.permute.xlu0 %1879
    %1882 = vset.pattern.permute.xlu0 5
    %1883 = vperm.xlu0 %1882, %v547
    %v1884 = vpop.permute.xlu0 %1883
    %v1886 = vmul.f32 %v1824, %v499
    %v1887 = vmul.f32 %v1828, %v500
    %v1888 = vmul.f32 %v1832, %v501
    %v1889 = vmul.f32 %v1836, %v502
    %v1890 = vmul.f32 %v1840, %v503
    %v1891 = vmul.f32 %v1844, %v504
    %v1892 = vmul.f32 %v1848, %v505
    %v1893 = vmul.f32 %v1852, %v506
    %v1894 = vmul.f32 %v1856, %v507
    %v1895 = vmul.f32 %v1860, %v508
    %v1896 = vmul.f32 %v1864, %v509
    %v1897 = vmul.f32 %v1868, %v510
    %v1898 = vmul.f32 %v1872, %v511
    %v1899 = vmul.f32 %v1876, %v512
    %v1900 = vmul.f32 %v1880, %v513
    %v1901 = vmul.f32 %v1884, %v514
    %v1902 = vlaneseq
    %v1903 = vshrl.u32 %v1902, 7
    %v1904 = vsub.s32 5, %v1903
    %v1905 = vrot.slane %v531, %v1904
    %v1906 = vmul.f32 %v1886, %v1905
    %v1907 = vmul.f32 %v1887, %v1905
    %v1908 = vmul.f32 %v1888, %v1905
    %v1909 = vmul.f32 %v1889, %v1905
    %v1910 = vmul.f32 %v1890, %v1905
    %v1911 = vmul.f32 %v1891, %v1905
    %v1912 = vmul.f32 %v1892, %v1905
    %v1913 = vmul.f32 %v1893, %v1905
    %v1914 = vmul.f32 %v1894, %v1905
    %v1915 = vmul.f32 %v1895, %v1905
    %v1916 = vmul.f32 %v1896, %v1905
    %v1917 = vmul.f32 %v1897, %v1905
    %v1918 = vmul.f32 %v1898, %v1905
    %v1919 = vmul.f32 %v1899, %v1905
    %v1920 = vmul.f32 %v1900, %v1905
    %v1921 = vmul.f32 %v1901, %v1905
    %v1922 = vpack.c.bf16 %v1907, %v1906
    %v1923 = vpack.c.bf16 %v1909, %v1908
    %v1924 = vpack.c.bf16 %v1911, %v1910
    %v1925 = vpack.c.bf16 %v1913, %v1912
    %v1926 = vpack.c.bf16 %v1915, %v1914
    %v1927 = vpack.c.bf16 %v1917, %v1916
    %v1928 = vpack.c.bf16 %v1919, %v1918
    %v1929 = vpack.c.bf16 %v1921, %v1920
    %1930 = vmatprep.subr.bf16.mxu0 0
    %1931 = vmatpush1.bf16.msra.mxu0 %v704
    %1932 = vmatprep.subr.bf16.mxu0 0
    %1933 = vmatpush1.bf16.msra.mxu0 %v705
    %1934 = vmatprep.subr.bf16.mxu0 0
    %1935 = vmatpush1.bf16.msra.mxu0 %v706
    %1936 = vmatprep.subr.bf16.mxu0 0
    %1937 = vmatpush1.bf16.msra.mxu0 %v707
    %1938 = vmatprep.subr.bf16.mxu0 0
    %1939 = vmatpush1.bf16.msra.mxu0 %v708
    %1940 = vmatprep.subr.bf16.mxu0 0
    %1941 = vmatpush1.bf16.msra.mxu0 %v709
    %1942 = vmatprep.subr.bf16.mxu0 0
    %1943 = vmatpush1.bf16.msra.mxu0 %v710
    %1944 = vmatprep.subr.bf16.mxu0 0
    %1945 = vmatpush1.bf16.msra.mxu0 %v711
    %1946 = vmatprep.subr.bf16.mxu0 0
    %1947 = vmatpush1.bf16.msra.mxu0 0
    %1948 = vmatprep.subr.bf16.mxu0 0
    %1949 = vmatpush1.bf16.msra.mxu0 0
    %1950 = vmatprep.subr.bf16.mxu0 0
    %1951 = vmatpush1.bf16.msra.mxu0 0
    %1952 = vmatprep.subr.bf16.mxu0 0
    %1953 = vmatpush1.bf16.msra.mxu0 0
    %1954 = vmatprep.subr.bf16.mxu0 0
    %1955 = vmatpush1.bf16.msra.mxu0 0
    %1956 = vmatprep.subr.bf16.mxu0 0
    %1957 = vmatpush1.bf16.msra.mxu0 0
    %1958 = vmatprep.subr.bf16.mxu0 0
    %1959 = vmatpush1.bf16.msra.mxu0 0
    %1960 = vmatprep.subr.bf16.mxu0 0
    %1961 = vmatpush1.bf16.msra.mxu0 0
    %1962 = vmatprep.mubr.bf16.mxu0 0
    %1963 = vmatmul.mubr.bf16.gmra.mrb[0].mxu0 %v1922
    %v1964 = vpop.f32.mrb[0].mxu0
    %v1965 = vadd.f32 0.0, %v1964
    %v1966 = vpop.f32.mrb[0].mxu0
    %v1967 = vpop.f32.mrb[0].mxu0
    %v1968 = vadd.f32 0.0, %v1967
    %v1969 = vpop.f32.mrb[0].mxu0
    %1970 = vmatprep.mubr.bf16.mxu0 0
    %1971 = vmatmul.mubr.bf16.gmra.mrb[0].mxu0 %v1923
    %v1972 = vpop.f32.mrb[0].mxu0
    %v1973 = vadd.f32 0.0, %v1972
    %v1974 = vpop.f32.mrb[0].mxu0
    %v1975 = vpop.f32.mrb[0].mxu0
    %v1976 = vadd.f32 0.0, %v1975
    %v1977 = vpop.f32.mrb[0].mxu0
    %1978 = vmatprep.mubr.bf16.mxu0 0
    %1979 = vmatmul.mubr.bf16.gmra.mrb[0].mxu0 %v1924
    %v1980 = vpop.f32.mrb[0].mxu0
    %v1981 = vadd.f32 0.0, %v1980
    %v1982 = vpop.f32.mrb[0].mxu0
    %v1983 = vpop.f32.mrb[0].mxu0
    %v1984 = vadd.f32 0.0, %v1983
    %v1985 = vpop.f32.mrb[0].mxu0
    %1986 = vmatprep.mubr.bf16.mxu0 0
    %1987 = vmatmul.mubr.bf16.gmra.mrb[0].mxu0 %v1925
    %v1988 = vpop.f32.mrb[0].mxu0
    %v1989 = vadd.f32 0.0, %v1988
    %v1990 = vpop.f32.mrb[0].mxu0
    %v1991 = vpop.f32.mrb[0].mxu0
    %v1992 = vadd.f32 0.0, %v1991
    %v1993 = vpop.f32.mrb[0].mxu0
    %1994 = vmatprep.mubr.bf16.mxu0 0
    %1995 = vmatmul.mubr.bf16.gmra.mrb[0].mxu0 %v1926
    %v1996 = vpop.f32.mrb[0].mxu0
    %v1997 = vadd.f32 0.0, %v1996
    %v1998 = vpop.f32.mrb[0].mxu0
    %v1999 = vpop.f32.mrb[0].mxu0
    %v2000 = vadd.f32 0.0, %v1999
    %v2001 = vpop.f32.mrb[0].mxu0
    %2002 = vmatprep.mubr.bf16.mxu0 0
    %2003 = vmatmul.mubr.bf16.gmra.mrb[0].mxu0 %v1927
    %v2004 = vpop.f32.mrb[0].mxu0
    %v2005 = vadd.f32 0.0, %v2004
    %v2006 = vpop.f32.mrb[0].mxu0
    %v2007 = vpop.f32.mrb[0].mxu0
    %v2008 = vadd.f32 0.0, %v2007
    %v2009 = vpop.f32.mrb[0].mxu0
    %2010 = vmatprep.mubr.bf16.mxu0 0
    %2011 = vmatmul.mubr.bf16.gmra.mrb[0].mxu0 %v1928
    %v2012 = vpop.f32.mrb[0].mxu0
    %v2013 = vadd.f32 0.0, %v2012
    %v2014 = vpop.f32.mrb[0].mxu0
    %v2015 = vpop.f32.mrb[0].mxu0
    %v2016 = vadd.f32 0.0, %v2015
    %v2017 = vpop.f32.mrb[0].mxu0
    %2018 = vmatprep.mubr.bf16.mxu0 0
    %2019 = vmatmul.mubr.bf16.gmra.mrb[0].mxu0 %v1929
    %v2020 = vpop.f32.mrb[0].mxu0
    %v2021 = vadd.f32 0.0, %v2020
    %v2022 = vpop.f32.mrb[0].mxu0
    %v2023 = vpop.f32.mrb[0].mxu0
    %v2024 = vadd.f32 0.0, %v2023
    %v2025 = vpop.f32.mrb[0].mxu0
    %2026 = vdwg.mxu0
    %v2027 = vmul.f32 %v128, %v1965
    %v2028 = vmul.f32 %v129, %v1968
    %v2029 = vmul.f32 %v130, %v1973
    %v2030 = vmul.f32 %v131, %v1976
    %v2031 = vmul.f32 %v132, %v1981
    %v2032 = vmul.f32 %v133, %v1984
    %v2033 = vmul.f32 %v134, %v1989
    %v2034 = vmul.f32 %v135, %v1992
    %v2035 = vmul.f32 %v136, %v1997
    %v2036 = vmul.f32 %v137, %v2000
    %v2037 = vmul.f32 %v138, %v2005
    %v2038 = vmul.f32 %v139, %v2008
    %v2039 = vmul.f32 %v140, %v2013
    %v2040 = vmul.f32 %v141, %v2016
    %v2041 = vmul.f32 %v142, %v2021
    %v2042 = vmul.f32 %v143, %v2024
    %v2043 = vadd.f32 %v2027, %v2028
    %v2044 = vadd.f32 %v2043, %v2029
    %v2045 = vadd.f32 %v2044, %v2030
    %v2046 = vadd.f32 %v2045, %v2031
    %v2047 = vadd.f32 %v2046, %v2032
    %v2048 = vadd.f32 %v2047, %v2033
    %v2049 = vadd.f32 %v2048, %v2034
    %v2050 = vadd.f32 %v2049, %v2035
    %v2051 = vadd.f32 %v2050, %v2036
    %v2052 = vadd.f32 %v2051, %v2037
    %v2053 = vadd.f32 %v2052, %v2038
    %v2054 = vadd.f32 %v2053, %v2039
    %v2055 = vadd.f32 %v2054, %v2040
    %v2056 = vadd.f32 %v2055, %v2041
    %v2057 = vadd.f32 %v2056, %v2042
    %v2058 = vrot.slane %v2057, 4
    %v2059 = vadd.f32 %v2057, %v2058
    %v2060 = vrot.slane %v2059, 2
    %v2061 = vadd.f32 %v2059, %v2060
    %v2062 = vrot.slane %v2061, 1
    %v2063 = vadd.f32 %v2061, %v2062
    %2064 = vset.pattern.permute.xlu0 6
    %2065 = vperm.xlu0 %2064, %v532
    %v2066 = vpop.permute.xlu0 %2065
    %2068 = vset.pattern.permute.xlu0 6
    %2069 = vperm.xlu0 %2068, %v533
    %v2070 = vpop.permute.xlu0 %2069
    %2072 = vset.pattern.permute.xlu0 6
    %2073 = vperm.xlu0 %2072, %v534
    %v2074 = vpop.permute.xlu0 %2073
    %2076 = vset.pattern.permute.xlu0 6
    %2077 = vperm.xlu0 %2076, %v535
    %v2078 = vpop.permute.xlu0 %2077
    %2080 = vset.pattern.permute.xlu0 6
    %2081 = vperm.xlu0 %2080, %v536
    %v2082 = vpop.permute.xlu0 %2081
    %2084 = vset.pattern.permute.xlu0 6
    %2085 = vperm.xlu0 %2084, %v537
    %v2086 = vpop.permute.xlu0 %2085
    %2088 = vset.pattern.permute.xlu0 6
    %2089 = vperm.xlu0 %2088, %v538
    %v2090 = vpop.permute.xlu0 %2089
    %2092 = vset.pattern.permute.xlu0 6
    %2093 = vperm.xlu0 %2092, %v539
    %v2094 = vpop.permute.xlu0 %2093
    %2096 = vset.pattern.permute.xlu0 6
    %2097 = vperm.xlu0 %2096, %v540
    %v2098 = vpop.permute.xlu0 %2097
    %2100 = vset.pattern.permute.xlu0 6
    %2101 = vperm.xlu0 %2100, %v541
    %v2102 = vpop.permute.xlu0 %2101
    %2104 = vset.pattern.permute.xlu0 6
    %2105 = vperm.xlu0 %2104, %v542
    %v2106 = vpop.permute.xlu0 %2105
    %2108 = vset.pattern.permute.xlu0 6
    %2109 = vperm.xlu0 %2108, %v543
    %v2110 = vpop.permute.xlu0 %2109
    %2112 = vset.pattern.permute.xlu0 6
    %2113 = vperm.xlu0 %2112, %v544
    %v2114 = vpop.permute.xlu0 %2113
    %2116 = vset.pattern.permute.xlu0 6
    %2117 = vperm.xlu0 %2116, %v545
    %v2118 = vpop.permute.xlu0 %2117
    %2120 = vset.pattern.permute.xlu0 6
    %2121 = vperm.xlu0 %2120, %v546
    %v2122 = vpop.permute.xlu0 %2121
    %2124 = vset.pattern.permute.xlu0 6
    %2125 = vperm.xlu0 %2124, %v547
    %v2126 = vpop.permute.xlu0 %2125
    %v2128 = vmul.f32 %v2066, %v499
    %v2129 = vmul.f32 %v2070, %v500
    %v2130 = vmul.f32 %v2074, %v501
    %v2131 = vmul.f32 %v2078, %v502
    %v2132 = vmul.f32 %v2082, %v503
    %v2133 = vmul.f32 %v2086, %v504
    %v2134 = vmul.f32 %v2090, %v505
    %v2135 = vmul.f32 %v2094, %v506
    %v2136 = vmul.f32 %v2098, %v507
    %v2137 = vmul.f32 %v2102, %v508
    %v2138 = vmul.f32 %v2106, %v509
    %v2139 = vmul.f32 %v2110, %v510
    %v2140 = vmul.f32 %v2114, %v511
    %v2141 = vmul.f32 %v2118, %v512
    %v2142 = vmul.f32 %v2122, %v513
    %v2143 = vmul.f32 %v2126, %v514
    %v2144 = vlaneseq
    %v2145 = vshrl.u32 %v2144, 7
    %v2146 = vsub.s32 6, %v2145
    %v2147 = vrot.slane %v531, %v2146
    %v2148 = vmul.f32 %v2128, %v2147
    %v2149 = vmul.f32 %v2129, %v2147
    %v2150 = vmul.f32 %v2130, %v2147
    %v2151 = vmul.f32 %v2131, %v2147
    %v2152 = vmul.f32 %v2132, %v2147
    %v2153 = vmul.f32 %v2133, %v2147
    %v2154 = vmul.f32 %v2134, %v2147
    %v2155 = vmul.f32 %v2135, %v2147
    %v2156 = vmul.f32 %v2136, %v2147
    %v2157 = vmul.f32 %v2137, %v2147
    %v2158 = vmul.f32 %v2138, %v2147
    %v2159 = vmul.f32 %v2139, %v2147
    %v2160 = vmul.f32 %v2140, %v2147
    %v2161 = vmul.f32 %v2141, %v2147
    %v2162 = vmul.f32 %v2142, %v2147
    %v2163 = vmul.f32 %v2143, %v2147
    %v2164 = vpack.c.bf16 %v2149, %v2148
    %v2165 = vpack.c.bf16 %v2151, %v2150
    %v2166 = vpack.c.bf16 %v2153, %v2152
    %v2167 = vpack.c.bf16 %v2155, %v2154
    %v2168 = vpack.c.bf16 %v2157, %v2156
    %v2169 = vpack.c.bf16 %v2159, %v2158
    %v2170 = vpack.c.bf16 %v2161, %v2160
    %v2171 = vpack.c.bf16 %v2163, %v2162
    %2172 = vmatprep.subr.bf16.mxu0 0
    %2173 = vmatpush1.bf16.msra.mxu0 %v704
    %2174 = vmatprep.subr.bf16.mxu0 0
    %2175 = vmatpush1.bf16.msra.mxu0 %v705
    %2176 = vmatprep.subr.bf16.mxu0 0
    %2177 = vmatpush1.bf16.msra.mxu0 %v706
    %2178 = vmatprep.subr.bf16.mxu0 0
    %2179 = vmatpush1.bf16.msra.mxu0 %v707
    %2180 = vmatprep.subr.bf16.mxu0 0
    %2181 = vmatpush1.bf16.msra.mxu0 %v708
    %2182 = vmatprep.subr.bf16.mxu0 0
    %2183 = vmatpush1.bf16.msra.mxu0 %v709
    %2184 = vmatprep.subr.bf16.mxu0 0
    %2185 = vmatpush1.bf16.msra.mxu0 %v710
    %2186 = vmatprep.subr.bf16.mxu0 0
    %2187 = vmatpush1.bf16.msra.mxu0 %v711
    %2188 = vmatprep.subr.bf16.mxu0 0
    %2189 = vmatpush1.bf16.msra.mxu0 0
    %2190 = vmatprep.subr.bf16.mxu0 0
    %2191 = vmatpush1.bf16.msra.mxu0 0
    %2192 = vmatprep.subr.bf16.mxu0 0
    %2193 = vmatpush1.bf16.msra.mxu0 0
    %2194 = vmatprep.subr.bf16.mxu0 0
    %2195 = vmatpush1.bf16.msra.mxu0 0
    %2196 = vmatprep.subr.bf16.mxu0 0
    %2197 = vmatpush1.bf16.msra.mxu0 0
    %2198 = vmatprep.subr.bf16.mxu0 0
    %2199 = vmatpush1.bf16.msra.mxu0 0
    %2200 = vmatprep.subr.bf16.mxu0 0
    %2201 = vmatpush1.bf16.msra.mxu0 0
    %2202 = vmatprep.subr.bf16.mxu0 0
    %2203 = vmatpush1.bf16.msra.mxu0 0
    %2204 = vmatprep.mubr.bf16.mxu0 0
    %2205 = vmatmul.mubr.bf16.gmra.mrb[0].mxu0 %v2164
    %v2206 = vpop.f32.mrb[0].mxu0
    %v2207 = vadd.f32 0.0, %v2206
    %v2208 = vpop.f32.mrb[0].mxu0
    %v2209 = vpop.f32.mrb[0].mxu0
    %v2210 = vadd.f32 0.0, %v2209
    %v2211 = vpop.f32.mrb[0].mxu0
    %2212 = vmatprep.mubr.bf16.mxu0 0
    %2213 = vmatmul.mubr.bf16.gmra.mrb[0].mxu0 %v2165
    %v2214 = vpop.f32.mrb[0].mxu0
    %v2215 = vadd.f32 0.0, %v2214
    %v2216 = vpop.f32.mrb[0].mxu0
    %v2217 = vpop.f32.mrb[0].mxu0
    %v2218 = vadd.f32 0.0, %v2217
    %v2219 = vpop.f32.mrb[0].mxu0
    %2220 = vmatprep.mubr.bf16.mxu0 0
    %2221 = vmatmul.mubr.bf16.gmra.mrb[0].mxu0 %v2166
    %v2222 = vpop.f32.mrb[0].mxu0
    %v2223 = vadd.f32 0.0, %v2222
    %v2224 = vpop.f32.mrb[0].mxu0
    %v2225 = vpop.f32.mrb[0].mxu0
    %v2226 = vadd.f32 0.0, %v2225
    %v2227 = vpop.f32.mrb[0].mxu0
    %2228 = vmatprep.mubr.bf16.mxu0 0
    %2229 = vmatmul.mubr.bf16.gmra.mrb[0].mxu0 %v2167
    %v2230 = vpop.f32.mrb[0].mxu0
    %v2231 = vadd.f32 0.0, %v2230
    %v2232 = vpop.f32.mrb[0].mxu0
    %v2233 = vpop.f32.mrb[0].mxu0
    %v2234 = vadd.f32 0.0, %v2233
    %v2235 = vpop.f32.mrb[0].mxu0
    %2236 = vmatprep.mubr.bf16.mxu0 0
    %2237 = vmatmul.mubr.bf16.gmra.mrb[0].mxu0 %v2168
    %v2238 = vpop.f32.mrb[0].mxu0
    %v2239 = vadd.f32 0.0, %v2238
    %v2240 = vpop.f32.mrb[0].mxu0
    %v2241 = vpop.f32.mrb[0].mxu0
    %v2242 = vadd.f32 0.0, %v2241
    %v2243 = vpop.f32.mrb[0].mxu0
    %2244 = vmatprep.mubr.bf16.mxu0 0
    %2245 = vmatmul.mubr.bf16.gmra.mrb[0].mxu0 %v2169
    %v2246 = vpop.f32.mrb[0].mxu0
    %v2247 = vadd.f32 0.0, %v2246
    %v2248 = vpop.f32.mrb[0].mxu0
    %v2249 = vpop.f32.mrb[0].mxu0
    %v2250 = vadd.f32 0.0, %v2249
    %v2251 = vpop.f32.mrb[0].mxu0
    %2252 = vmatprep.mubr.bf16.mxu0 0
    %2253 = vmatmul.mubr.bf16.gmra.mrb[0].mxu0 %v2170
    %v2254 = vpop.f32.mrb[0].mxu0
    %v2255 = vadd.f32 0.0, %v2254
    %v2256 = vpop.f32.mrb[0].mxu0
    %v2257 = vpop.f32.mrb[0].mxu0
    %v2258 = vadd.f32 0.0, %v2257
    %v2259 = vpop.f32.mrb[0].mxu0
    %2260 = vmatprep.mubr.bf16.mxu0 0
    %2261 = vmatmul.mubr.bf16.gmra.mrb[0].mxu0 %v2171
    %v2262 = vpop.f32.mrb[0].mxu0
    %v2263 = vadd.f32 0.0, %v2262
    %v2264 = vpop.f32.mrb[0].mxu0
    %v2265 = vpop.f32.mrb[0].mxu0
    %v2266 = vadd.f32 0.0, %v2265
    %v2267 = vpop.f32.mrb[0].mxu0
    %2268 = vdwg.mxu0
    %v2269 = vmul.f32 %v128, %v2207
    %v2270 = vmul.f32 %v129, %v2210
    %v2271 = vmul.f32 %v130, %v2215
    %v2272 = vmul.f32 %v131, %v2218
    %v2273 = vmul.f32 %v132, %v2223
    %v2274 = vmul.f32 %v133, %v2226
    %v2275 = vmul.f32 %v134, %v2231
    %v2276 = vmul.f32 %v135, %v2234
    %v2277 = vmul.f32 %v136, %v2239
    %v2278 = vmul.f32 %v137, %v2242
    %v2279 = vmul.f32 %v138, %v2247
    %v2280 = vmul.f32 %v139, %v2250
    %v2281 = vmul.f32 %v140, %v2255
    %v2282 = vmul.f32 %v141, %v2258
    %v2283 = vmul.f32 %v142, %v2263
    %v2284 = vmul.f32 %v143, %v2266
    %v2285 = vadd.f32 %v2269, %v2270
    %v2286 = vadd.f32 %v2285, %v2271
    %v2287 = vadd.f32 %v2286, %v2272
    %v2288 = vadd.f32 %v2287, %v2273
    %v2289 = vadd.f32 %v2288, %v2274
    %v2290 = vadd.f32 %v2289, %v2275
    %v2291 = vadd.f32 %v2290, %v2276
    %v2292 = vadd.f32 %v2291, %v2277
    %v2293 = vadd.f32 %v2292, %v2278
    %v2294 = vadd.f32 %v2293, %v2279
    %v2295 = vadd.f32 %v2294, %v2280
    %v2296 = vadd.f32 %v2295, %v2281
    %v2297 = vadd.f32 %v2296, %v2282
    %v2298 = vadd.f32 %v2297, %v2283
    %v2299 = vadd.f32 %v2298, %v2284
    %v2300 = vrot.slane %v2299, 4
    %v2301 = vadd.f32 %v2299, %v2300
    %v2302 = vrot.slane %v2301, 2
    %v2303 = vadd.f32 %v2301, %v2302
    %v2304 = vrot.slane %v2303, 1
    %v2305 = vadd.f32 %v2303, %v2304
    %2306 = vset.pattern.permute.xlu0 7
    %2307 = vperm.xlu0 %2306, %v532
    %v2308 = vpop.permute.xlu0 %2307
    %2310 = vset.pattern.permute.xlu0 7
    %2311 = vperm.xlu0 %2310, %v533
    %v2312 = vpop.permute.xlu0 %2311
    %2314 = vset.pattern.permute.xlu0 7
    %2315 = vperm.xlu0 %2314, %v534
    %v2316 = vpop.permute.xlu0 %2315
    %2318 = vset.pattern.permute.xlu0 7
    %2319 = vperm.xlu0 %2318, %v535
    %v2320 = vpop.permute.xlu0 %2319
    %2322 = vset.pattern.permute.xlu0 7
    %2323 = vperm.xlu0 %2322, %v536
    %v2324 = vpop.permute.xlu0 %2323
    %2326 = vset.pattern.permute.xlu0 7
    %2327 = vperm.xlu0 %2326, %v537
    %v2328 = vpop.permute.xlu0 %2327
    %2330 = vset.pattern.permute.xlu0 7
    %2331 = vperm.xlu0 %2330, %v538
    %v2332 = vpop.permute.xlu0 %2331
    %2334 = vset.pattern.permute.xlu0 7
    %2335 = vperm.xlu0 %2334, %v539
    %v2336 = vpop.permute.xlu0 %2335
    %2338 = vset.pattern.permute.xlu0 7
    %2339 = vperm.xlu0 %2338, %v540
    %v2340 = vpop.permute.xlu0 %2339
    %2342 = vset.pattern.permute.xlu0 7
    %2343 = vperm.xlu0 %2342, %v541
    %v2344 = vpop.permute.xlu0 %2343
    %2346 = vset.pattern.permute.xlu0 7
    %2347 = vperm.xlu0 %2346, %v542
    %v2348 = vpop.permute.xlu0 %2347
    %2350 = vset.pattern.permute.xlu0 7
    %2351 = vperm.xlu0 %2350, %v543
    %v2352 = vpop.permute.xlu0 %2351
    %2354 = vset.pattern.permute.xlu0 7
    %2355 = vperm.xlu0 %2354, %v544
    %v2356 = vpop.permute.xlu0 %2355
    %2358 = vset.pattern.permute.xlu0 7
    %2359 = vperm.xlu0 %2358, %v545
    %v2360 = vpop.permute.xlu0 %2359
    %2362 = vset.pattern.permute.xlu0 7
    %2363 = vperm.xlu0 %2362, %v546
    %v2364 = vpop.permute.xlu0 %2363
    %2366 = vset.pattern.permute.xlu0 7
    %2367 = vperm.xlu0 %2366, %v547
    %v2368 = vpop.permute.xlu0 %2367
    %v2370 = vmul.f32 %v2308, %v499
    %v2371 = vmul.f32 %v2312, %v500
    %v2372 = vmul.f32 %v2316, %v501
    %v2373 = vmul.f32 %v2320, %v502
    %v2374 = vmul.f32 %v2324, %v503
    %v2375 = vmul.f32 %v2328, %v504
    %v2376 = vmul.f32 %v2332, %v505
    %v2377 = vmul.f32 %v2336, %v506
    %v2378 = vmul.f32 %v2340, %v507
    %v2379 = vmul.f32 %v2344, %v508
    %v2380 = vmul.f32 %v2348, %v509
    %v2381 = vmul.f32 %v2352, %v510
    %v2382 = vmul.f32 %v2356, %v511
    %v2383 = vmul.f32 %v2360, %v512
    %v2384 = vmul.f32 %v2364, %v513
    %v2385 = vmul.f32 %v2368, %v514
    %v2386 = vlaneseq
    %v2387 = vshrl.u32 %v2386, 7
    %v2388 = vsub.s32 7, %v2387
    %v2389 = vrot.slane %v531, %v2388
    %v2390 = vmul.f32 %v2370, %v2389
    %v2391 = vmul.f32 %v2371, %v2389
    %v2392 = vmul.f32 %v2372, %v2389
    %v2393 = vmul.f32 %v2373, %v2389
    %v2394 = vmul.f32 %v2374, %v2389
    %v2395 = vmul.f32 %v2375, %v2389
    %v2396 = vmul.f32 %v2376, %v2389
    %v2397 = vmul.f32 %v2377, %v2389
    %v2398 = vmul.f32 %v2378, %v2389
    %v2399 = vmul.f32 %v2379, %v2389
    %v2400 = vmul.f32 %v2380, %v2389
    %v2401 = vmul.f32 %v2381, %v2389
    %v2402 = vmul.f32 %v2382, %v2389
    %v2403 = vmul.f32 %v2383, %v2389
    %v2404 = vmul.f32 %v2384, %v2389
    %v2405 = vmul.f32 %v2385, %v2389
    %v2406 = vpack.c.bf16 %v2391, %v2390
    %v2407 = vpack.c.bf16 %v2393, %v2392
    %v2408 = vpack.c.bf16 %v2395, %v2394
    %v2409 = vpack.c.bf16 %v2397, %v2396
    %v2410 = vpack.c.bf16 %v2399, %v2398
    %v2411 = vpack.c.bf16 %v2401, %v2400
    %v2412 = vpack.c.bf16 %v2403, %v2402
    %v2413 = vpack.c.bf16 %v2405, %v2404
    %2414 = vmatprep.subr.bf16.mxu0 0
    %2415 = vmatpush1.bf16.msra.mxu0 %v704
    %2416 = vmatprep.subr.bf16.mxu0 0
    %2417 = vmatpush1.bf16.msra.mxu0 %v705
    %2418 = vmatprep.subr.bf16.mxu0 0
    %2419 = vmatpush1.bf16.msra.mxu0 %v706
    %2420 = vmatprep.subr.bf16.mxu0 0
    %2421 = vmatpush1.bf16.msra.mxu0 %v707
    %2422 = vmatprep.subr.bf16.mxu0 0
    %2423 = vmatpush1.bf16.msra.mxu0 %v708
    %2424 = vmatprep.subr.bf16.mxu0 0
    %2425 = vmatpush1.bf16.msra.mxu0 %v709
    %2426 = vmatprep.subr.bf16.mxu0 0
    %2427 = vmatpush1.bf16.msra.mxu0 %v710
    %2428 = vmatprep.subr.bf16.mxu0 0
    %2429 = vmatpush1.bf16.msra.mxu0 %v711
    %2430 = vmatprep.subr.bf16.mxu0 0
    %2431 = vmatpush1.bf16.msra.mxu0 0
    %2432 = vmatprep.subr.bf16.mxu0 0
    %2433 = vmatpush1.bf16.msra.mxu0 0
    %2434 = vmatprep.subr.bf16.mxu0 0
    %2435 = vmatpush1.bf16.msra.mxu0 0
    %2436 = vmatprep.subr.bf16.mxu0 0
    %2437 = vmatpush1.bf16.msra.mxu0 0
    %2438 = vmatprep.subr.bf16.mxu0 0
    %2439 = vmatpush1.bf16.msra.mxu0 0
    %2440 = vmatprep.subr.bf16.mxu0 0
    %2441 = vmatpush1.bf16.msra.mxu0 0
    %2442 = vmatprep.subr.bf16.mxu0 0
    %2443 = vmatpush1.bf16.msra.mxu0 0
    %2444 = vmatprep.subr.bf16.mxu0 0
    %2445 = vmatpush1.bf16.msra.mxu0 0
    %2446 = vmatprep.mubr.bf16.mxu0 0
    %2447 = vmatmul.mubr.bf16.gmra.mrb[0].mxu0 %v2406
    %v2448 = vpop.f32.mrb[0].mxu0
    %v2449 = vadd.f32 0.0, %v2448
    %v2450 = vpop.f32.mrb[0].mxu0
    %v2451 = vpop.f32.mrb[0].mxu0
    %v2452 = vadd.f32 0.0, %v2451
    %v2453 = vpop.f32.mrb[0].mxu0
    %2454 = vmatprep.mubr.bf16.mxu0 0
    %2455 = vmatmul.mubr.bf16.gmra.mrb[0].mxu0 %v2407
    %v2456 = vpop.f32.mrb[0].mxu0
    %v2457 = vadd.f32 0.0, %v2456
    %v2458 = vpop.f32.mrb[0].mxu0
    %v2459 = vpop.f32.mrb[0].mxu0
    %v2460 = vadd.f32 0.0, %v2459
    %v2461 = vpop.f32.mrb[0].mxu0
    %2462 = vmatprep.mubr.bf16.mxu0 0
    %2463 = vmatmul.mubr.bf16.gmra.mrb[0].mxu0 %v2408
    %v2464 = vpop.f32.mrb[0].mxu0
    %v2465 = vadd.f32 0.0, %v2464
    %v2466 = vpop.f32.mrb[0].mxu0
    %v2467 = vpop.f32.mrb[0].mxu0
    %v2468 = vadd.f32 0.0, %v2467
    %v2469 = vpop.f32.mrb[0].mxu0
    %2470 = vmatprep.mubr.bf16.mxu0 0
    %2471 = vmatmul.mubr.bf16.gmra.mrb[0].mxu0 %v2409
    %v2472 = vpop.f32.mrb[0].mxu0
    %v2473 = vadd.f32 0.0, %v2472
    %v2474 = vpop.f32.mrb[0].mxu0
    %v2475 = vpop.f32.mrb[0].mxu0
    %v2476 = vadd.f32 0.0, %v2475
    %v2477 = vpop.f32.mrb[0].mxu0
    %2478 = vmatprep.mubr.bf16.mxu0 0
    %2479 = vmatmul.mubr.bf16.gmra.mrb[0].mxu0 %v2410
    %v2480 = vpop.f32.mrb[0].mxu0
    %v2481 = vadd.f32 0.0, %v2480
    %v2482 = vpop.f32.mrb[0].mxu0
    %v2483 = vpop.f32.mrb[0].mxu0
    %v2484 = vadd.f32 0.0, %v2483
    %v2485 = vpop.f32.mrb[0].mxu0
    %2486 = vmatprep.mubr.bf16.mxu0 0
    %2487 = vmatmul.mubr.bf16.gmra.mrb[0].mxu0 %v2411
    %v2488 = vpop.f32.mrb[0].mxu0
    %v2489 = vadd.f32 0.0, %v2488
    %v2490 = vpop.f32.mrb[0].mxu0
    %v2491 = vpop.f32.mrb[0].mxu0
    %v2492 = vadd.f32 0.0, %v2491
    %v2493 = vpop.f32.mrb[0].mxu0
    %2494 = vmatprep.mubr.bf16.mxu0 0
    %2495 = vmatmul.mubr.bf16.gmra.mrb[0].mxu0 %v2412
    %v2496 = vpop.f32.mrb[0].mxu0
    %v2497 = vadd.f32 0.0, %v2496
    %v2498 = vpop.f32.mrb[0].mxu0
    %v2499 = vpop.f32.mrb[0].mxu0
    %v2500 = vadd.f32 0.0, %v2499
    %v2501 = vpop.f32.mrb[0].mxu0
    %2502 = vmatprep.mubr.bf16.mxu0 0
    %2503 = vmatmul.mubr.bf16.gmra.mrb[0].mxu0 %v2413
    %v2504 = vpop.f32.mrb[0].mxu0
    %v2505 = vadd.f32 0.0, %v2504
    %v2506 = vpop.f32.mrb[0].mxu0
    %v2507 = vpop.f32.mrb[0].mxu0
    %v2508 = vadd.f32 0.0, %v2507
    %v2509 = vpop.f32.mrb[0].mxu0
    %2510 = vdwg.mxu0
    %v2511 = vmul.f32 %v128, %v2449
    %v2512 = vmul.f32 %v129, %v2452
    %v2513 = vmul.f32 %v130, %v2457
    %v2514 = vmul.f32 %v131, %v2460
    %v2515 = vmul.f32 %v132, %v2465
    %v2516 = vmul.f32 %v133, %v2468
    %v2517 = vmul.f32 %v134, %v2473
    %v2518 = vmul.f32 %v135, %v2476
    %v2519 = vmul.f32 %v136, %v2481
    %v2520 = vmul.f32 %v137, %v2484
    %v2521 = vmul.f32 %v138, %v2489
    %v2522 = vmul.f32 %v139, %v2492
    %v2523 = vmul.f32 %v140, %v2497
    %v2524 = vmul.f32 %v141, %v2500
    %v2525 = vmul.f32 %v142, %v2505
    %v2526 = vmul.f32 %v143, %v2508
    %v2527 = vadd.f32 %v2511, %v2512
    %v2528 = vadd.f32 %v2527, %v2513
    %v2529 = vadd.f32 %v2528, %v2514
    %v2530 = vadd.f32 %v2529, %v2515
    %v2531 = vadd.f32 %v2530, %v2516
    %v2532 = vadd.f32 %v2531, %v2517
    %v2533 = vadd.f32 %v2532, %v2518
    %v2534 = vadd.f32 %v2533, %v2519
    %v2535 = vadd.f32 %v2534, %v2520
    %v2536 = vadd.f32 %v2535, %v2521
    %v2537 = vadd.f32 %v2536, %v2522
    %v2538 = vadd.f32 %v2537, %v2523
    %v2539 = vadd.f32 %v2538, %v2524
    %v2540 = vadd.f32 %v2539, %v2525
    %v2541 = vadd.f32 %v2540, %v2526
    %v2542 = vrot.slane %v2541, 4
    %v2543 = vadd.f32 %v2541, %v2542
    %v2544 = vrot.slane %v2543, 2
    %v2545 = vadd.f32 %v2543, %v2544
    %v2546 = vrot.slane %v2545, 1
    %v2547 = vadd.f32 %v2545, %v2546
    %vm2548 = vcmask 1040384
    %v2549 = vsel %vm2548, %v853, %v1095
    %vm2550 = vcmask 1041408
    %v2551 = vsel %vm2550, %v2549, %v1337
    %vm2552 = vcmask 1042432
    %v2553 = vsel %vm2552, %v2551, %v1579
    %vm2554 = vcmask 1043456
    %v2555 = vsel %vm2554, %v2553, %v1821
    %vm2556 = vcmask 1044480
    %v2557 = vsel %vm2556, %v2555, %v2063
    %vm2558 = vcmask 1045504
    %v2559 = vsel %vm2558, %v2557, %v2305
    %vm2560 = vcmask 1046528
    %v2561 = vsel %vm2560, %v2559, %v2547
    %v2562 = vld [vmem:[#allocation4] sm:$0xff]
    %v2563 = vadd.f32 %v2562, %v2561
    %2564 = vst [vmem:[#allocation16] sm:$0xff] %v2563
    // Predicated region
    $region58: #{tpu_custom_call.1} parent=1 // pred_check
      _
    $region59: #{tpu_custom_call.1} parent=1 // pred_check_branch
      %2566 = sbr.rel (0) target = $region61
    $region60: #{tpu_custom_call.1} parent=1 // pred_region
      %s2568 = ssub.s32 128, 128
      %2569 = vsyncadd [#allocation7], %s2568
      %s2571 = sshll.u32 [#allocation16], 4
      %s2572 = int_to_ptr.vmem [resolvable:$true] %s2571
      %2574 = dma.vmem_to_hbm [thread:$0]  %s2572, 128, %s8, [#allocation7]
    $region61: #{tpu_custom_call.1} parent=1 // pred_fallthru
      _
    // Predicated region
    $region62: #{tpu_custom_call.1} parent=1 // pred_check
      _
    $region63: #{tpu_custom_call.1} parent=1 // pred_check_branch
      %2576 = sbr.rel (0) target = $region65
    $region64: #{tpu_custom_call.1} parent=1 // pred_region
      %2577 = dma.done [#allocation7], 128
    $region65: #{tpu_custom_call.1} parent=1 // pred_fallthru
      _
    %2578 = vsyncpa [#allocation6], 1
    %2579 = vsyncpa [#allocation9], 1
    %2580 = vsyncpa [#allocation12], 1
    %2581 = vsyncpa [#allocation15], 1
    %2582 = vsyncpa [#allocation7], 1

</llo_original>
